<compile_context>
chip_gen: v7x
topology: tpu7x:2x2x1
jax: 0.10.0
libtpu: 0.0.40
codegen_flags: <defaults>
</compile_context>

<pallas_src>
import functools

import jax
import jax.numpy as jnp
from jax.experimental import pallas as pl
from jax.experimental.pallas import tpu as pltpu


def _round_up(x, m):
    return (x + m - 1) // m * m


def _vdsr_kernel(x_ref, w_ref, mask_ref, o_ref, buf0, buf1, *, W):
    """One grid step = one of the 20 conv layers for one batch element.

    x_ref    : (1, C, L)        f32   input image, flat spatial axis (resident per n)
    w_ref    : (1, 3, F, 3*F)   bf16  this layer's packed weight (kw groups)
    mask_ref : (2, L)           f32   [not-left-edge, not-right-edge] column masks
    o_ref    : (1, C, L)        f32   output (written on the last layer only)
    buf0/1   : (F, LB)          bf16  ping-pong flat activation buffers with a
                                      1-element guard + one zero halo row on each
                                      side of the H*W interior (LB >= (H+2)*W + 2).
    """
    C = x_ref.shape[1]
    L = x_ref.shape[2]                 # H * W  (lane-dense flat spatial axis)
    S = W + 1                          # interior start inside the flat buffer

    l = pl.program_id(1)
    n_layers = pl.num_programs(1)

    not_left = mask_ref[0:1, :]        # (1, L): zero where w == 0
    not_right = mask_ref[1:2, :]       # (1, L): zero where w == W - 1

    @pl.when(l == 0)
    def _stage_input():
        # Zero both ping-pong buffers ONCE per image (the halo rows, the guard
        # columns and the zero-padded feature channels then stay zero for all
        # 20 layers, because every layer writes only the interior), and drop
        # the C real input channels into buf0's interior with one block store.
        buf0[...] = jnp.zeros_like(buf0)
        buf1[...] = jnp.zeros_like(buf1)
        buf0[0:C, S:S + L] = x_ref[0].astype(buf0.dtype)

    def conv_layer(src, dst):
        def tap_stack(kw):
            # Three vertical taps of horizontal offset kw, stacked along the
            # contraction axis -> (3*F, L).  These are static slices of the
            # same flat buffer; nothing 9x-sized is ever materialised.
            return jnp.concatenate(
                [src[:, kh * W + kw: kh * W + kw + L] for kh in range(3)],
                axis=0)

        # Three accumulating K=192 MXU matmuls with an f32 accumulator.  The
        # kw=0 / kw=2 groups read one element across the row seam; the
        # precomputed column masks zero exactly those contributions.
        acc = jnp.dot(w_ref[0, 1], tap_stack(1),
                      preferred_element_type=jnp.float32)
        acc = acc + not_left * jnp.dot(w_ref[0, 0], tap_stack(0),
                                       preferred_element_type=jnp.float32)
        acc = acc + not_right * jnp.dot(w_ref[0, 2], tap_stack(2),
                                        preferred_element_type=jnp.float32)

        @pl.when(l < n_layers - 1)
        def _():
            # Input conv + the 18 Conv_ReLU_Blocks: fused ReLU, activation
            # stays resident in VMEM (single interior block store).
            dst[:, S:S + L] = jnp.maximum(acc, 0.0).astype(dst.dtype)

        @pl.when(l == n_layers - 1)
        def _():
            # Output conv: fused residual add in f32, single lane-dense store.
            o_ref[0] = (acc[0:C, :] + x_ref[0].astype(jnp.float32)
                        ).astype(o_ref.dtype)

    # Ping-pong parity dispatch (static code duplication instead of dynamic
    # scratch indexing keeps the compute path simple for Mosaic).
    @pl.when(l % 2 == 0)
    def _even():
        conv_layer(buf0, buf1)

    @pl.when(l % 2 == 1)
    def _odd():
        conv_layer(buf1, buf0)


@jax.jit
def vdsr_forward(x, w_all):
    """x: (N, C, H, W) f32;  w_all: (20, 3, F, 3*F) bf16 packed weights."""
    N, C, H, W = x.shape
    n_layers, _, feat, _ = w_all.shape
    L = H * W
    LB = _round_up((H + 2) * W + 2, 128)   # flat buffer width (guard + 2 halo rows)

    x_flat = x.reshape(N, C, L)
    col = jnp.arange(L, dtype=jnp.int32) % W
    masks = jnp.stack([col != 0, col != W - 1]).astype(jnp.float32)   # (2, L)

    kernel = functools.partial(_vdsr_kernel, W=W)

    # TODO(synk): for large images (H, W >= 256) the f32 accumulator plus the two
    # ping-pong slabs exceed v7x's 64 MiB VMEM; switch to a row-tiled per-layer
    # variant with a 2-row halo (grid over N x row-tiles, both "parallel").
    out_flat = pl.pallas_call(
        kernel,
        out_shape=jax.ShapeDtypeStruct((N, C, L), x.dtype),
        grid=(N, n_layers),
        in_specs=[
            pl.BlockSpec((1, C, L), lambda n, l: (n, 0, 0)),        # image: resident per n
            pl.BlockSpec((1, 3, feat, 3 * feat),
                         lambda n, l: (l, 0, 0, 0)),                # per-layer weights
            pl.BlockSpec((2, L), lambda n, l: (0, 0)),              # edge masks: resident
        ],
        out_specs=pl.BlockSpec((1, C, L), lambda n, l: (n, 0, 0)),
        scratch_shapes=[pltpu.VMEM((feat, LB), jnp.bfloat16),
                        pltpu.VMEM((feat, LB), jnp.bfloat16)],
        compiler_params=pltpu.CompilerParams(
            dimension_semantics=("parallel", "arbitrary"),
            vmem_limit_bytes=64 * 1024 * 1024),
    )(x_flat, w_all, masks)
    return out_flat.reshape(N, C, H, W)


def pack_weights(w_input, w_mids, w_output, feat=64):
    """Pack OIHW 3x3 conv weights into the kernel's (20, kw, F, 3*F) bf16 stack.

    packed[layer, kw, co, kh*F + ci] = w[layer][co, ci, kh, kw].  Channel counts
    below F (the RGB input of the first conv, the RGB output of the last conv)
    are zero-padded so every fused layer is a uniform 64 -> 64 matmul.
    """
    def pack_one(w):
        c_out, c_in = w.shape[0], w.shape[1]
        w = jnp.transpose(w, (3, 0, 2, 1))                      # (kw, co, kh, ci)
        w = jnp.pad(w, ((0, 0), (0, feat - c_out), (0, 0), (0, feat - c_in)))
        return w.reshape(3, feat, 3 * feat)

    stack = ([pack_one(w_input)] + [pack_one(w) for w in w_mids]
             + [pack_one(w_output)])
    return jnp.stack(stack, axis=0).astype(jnp.bfloat16)


# ---------------------------- pure-JAX reference -----------------------------
def _conv_ref(x, w):
    return jax.lax.conv_general_dilated(
        x, w, window_strides=(1, 1), padding="SAME",
        dimension_numbers=("NCHW", "OIHW", "NCHW"),
        precision=jax.lax.Precision.HIGHEST)


def vdsr_reference(x, w_input, w_mids, w_output):
    out = jax.nn.relu(_conv_ref(x, w_input))
    for w in w_mids:
        out = jax.nn.relu(_conv_ref(out, w))
    return _conv_ref(out, w_output) + x


if __name__ == "__main__":
    key = jax.random.PRNGKey(0)
    N, C, H, W = 2, 3, 16, 16          # rgb=True -> in/out channels = 3
    FEAT = 64                          # VDSR hidden width
    n_mid = 18                         # number of Conv_ReLU_Blocks

    keys = jax.random.split(key, n_mid + 3)
    x = jax.random.normal(keys[0], (N, C, H, W), dtype=jnp.float32)

    def init_conv(k, c_out, c_in):
        # matches m.weight.data.normal_(0, sqrt(2 / (k*k*out_channels)))
        std = (2.0 / (9 * c_out)) ** 0.5
        return std * jax.random.normal(k, (c_out, c_in, 3, 3), dtype=jnp.float32)

    w_input = init_conv(keys[1], FEAT, C)
    w_mids = [init_conv(keys[2 + i], FEAT, FEAT) for i in range(n_mid)]
    w_output = init_conv(keys[2 + n_mid], C, FEAT)

    w_all = pack_weights(w_input, w_mids, w_output, feat=FEAT)   # (20, 3, 64, 192) bf16

    out = jax.block_until_ready(vdsr_forward(x, w_all))

    ref = vdsr_reference(x, w_input, w_mids, w_output)
    assert out.shape == x.shape
    max_err = float(jnp.max(jnp.abs(out - ref)))
    # bf16 storage/matmul with f32 accumulation through 20 stacked conv layers:
    # expected max abs deviation vs. the f32 reference is a few 1e-2, so the
    # tolerance is set for bf16 (a wrong tap / missing edge mask would be O(1)).
    assert jnp.allclose(out, ref, atol=7.5e-2, rtol=7.5e-2), (
        f"mismatch vs f32 reference, max abs err = {max_err}")

    print("KERNEL_OK")
</pallas_src>

<mosaic_0001>
module attributes {stable_mosaic.version = 11 : i64} {
  func.func @_vdsr_kernel(%arg0: i32, %arg1: i32, %arg2: memref<1x3x256xf32, #tpu.memory_space<vmem>>, %arg3: memref<1x3x64x192xbf16, #tpu.memory_space<vmem>>, %arg4: memref<2x256xf32, #tpu.memory_space<vmem>>, %arg5: memref<1x3x256xf32, #tpu.memory_space<vmem>>, %arg6: memref<64x384xbf16, #tpu.memory_space<vmem>>, %arg7: memref<64x384xbf16, #tpu.memory_space<vmem>>) attributes {dimension_semantics = [#tpu.dimension_semantics<parallel>, #tpu.dimension_semantics<arbitrary>], iteration_bounds = array<i64: 2, 20>, scalar_prefetch = 0 : i64, scratch_operands = 2 : i64, tpu.core_type = #tpu.core_type<tc>, window_params = [{transform_indices = @transform_0, window_bounds = array<i64: 1, 3, 256>}, {transform_indices = @transform_1, window_bounds = array<i64: 1, 3, 64, 192>}, {pipeline_mode = #tpu.pipeline_mode<synchronous>, transform_indices = @transform_2, window_bounds = array<i64: 2, 256>}, {transform_indices = @transform_3, window_bounds = array<i64: 1, 3, 256>}]} {
    %c0 = arith.constant 0 : index
    %c0_0 = arith.constant 0 : index
    %0 = vector.load %arg4[%c0, %c0_0] : memref<2x256xf32, #tpu.memory_space<vmem>>, vector<1x256xf32>
    %c1 = arith.constant 1 : index
    %c0_1 = arith.constant 0 : index
    %1 = vector.load %arg4[%c1, %c0_1] : memref<2x256xf32, #tpu.memory_space<vmem>>, vector<1x256xf32>
    %c0_i32 = arith.constant 0 : i32
    %2 = arith.cmpi eq, %arg1, %c0_i32 : i32
    %3 = arith.extui %2 : i1 to i32
    %c0_i32_2 = arith.constant 0 : i32
    %4 = arith.cmpi ne, %3, %c0_i32_2 : i32
    scf.if %4 {
      %cst = arith.constant 0.000000e+00 : bf16
      %31 = vector.broadcast %cst : bf16 to vector<64x384xbf16>
      %c0_17 = arith.constant 0 : index
      %c0_18 = arith.constant 0 : index
      %32 = vector.load %arg6[%c0_17, %c0_18] : memref<64x384xbf16, #tpu.memory_space<vmem>>, vector<64x384xbf16>
      tpu.vector_store %arg6[%c0_17, %c0_18], %31 {strides = array<i32>} : memref<64x384xbf16, #tpu.memory_space<vmem>>, vector<64x384xbf16>,
      %cst_19 = arith.constant 0.000000e+00 : bf16
      %33 = vector.broadcast %cst_19 : bf16 to vector<64x384xbf16>
      %c0_20 = arith.constant 0 : index
      %c0_21 = arith.constant 0 : index
      %34 = vector.load %arg7[%c0_20, %c0_21] : memref<64x384xbf16, #tpu.memory_space<vmem>>, vector<64x384xbf16>
      tpu.vector_store %arg7[%c0_20, %c0_21], %33 {strides = array<i32>} : memref<64x384xbf16, #tpu.memory_space<vmem>>, vector<64x384xbf16>,
      %c0_22 = arith.constant 0 : index
      %c0_23 = arith.constant 0 : index
      %c0_24 = arith.constant 0 : index
      %35 = vector.load %arg2[%c0_22, %c0_23, %c0_24] : memref<1x3x256xf32, #tpu.memory_space<vmem>>, vector<1x3x256xf32>
      %36 = vector.shape_cast %35 : vector<1x3x256xf32> to vector<3x256xf32>
      %37 = arith.truncf %36 : vector<3x256xf32> to vector<3x256xbf16>
      %c0_25 = arith.constant 0 : index
      %c17 = arith.constant 17 : index
      %38 = vector.load %arg6[%c0_25, %c17] : memref<64x384xbf16, #tpu.memory_space<vmem>>, vector<3x256xbf16>
      tpu.vector_store %arg6[%c0_25, %c17], %37 {strides = array<i32>} : memref<64x384xbf16, #tpu.memory_space<vmem>>, vector<3x256xbf16>,
    } else {
    }
    %c2_i32 = arith.constant 2 : i32
    %c0_i32_3 = arith.constant 0 : i32
    %5 = arith.cmpi eq, %c2_i32, %c0_i32_3 : i32
    %c1_i32 = arith.constant 1 : i32
    %6 = arith.select %5, %c1_i32, %c2_i32 : i32
    %7 = arith.remsi %arg1, %6 : i32
    %c0_i32_4 = arith.constant 0 : i32
    %8 = arith.cmpi ne, %7, %c0_i32_4 : i32
    %c0_i32_5 = arith.constant 0 : i32
    %9 = arith.cmpi slt, %7, %c0_i32_5 : i32
    %c0_i32_6 = arith.constant 0 : i32
    %10 = arith.cmpi slt, %6, %c0_i32_6 : i32
    %11 = arith.xori %9, %10 : i1
    %12 = arith.andi %11, %8 : i1
    %13 = arith.addi %7, %6 : i32
    %14 = arith.select %12, %13, %7 : i32
    %c0_i32_7 = arith.constant 0 : i32
    %15 = arith.cmpi eq, %14, %c0_i32_7 : i32
    %16 = arith.extui %15 : i1 to i32
    %c0_i32_8 = arith.constant 0 : i32
    %17 = arith.cmpi ne, %16, %c0_i32_8 : i32
    scf.if %17 {
      %c0_17 = arith.constant 0 : index
      %c1_18 = arith.constant 1 : index
      %c0_19 = arith.constant 0 : index
      %c0_20 = arith.constant 0 : index
      %31 = vector.load %arg3[%c0_17, %c1_18, %c0_19, %c0_20] : memref<1x3x64x192xbf16, #tpu.memory_space<vmem>>, vector<1x1x64x192xbf16>
      %32 = vector.shape_cast %31 : vector<1x1x64x192xbf16> to vector<64x192xbf16>
      %c0_21 = arith.constant 0 : index
      %c1_22 = arith.constant 1 : index
      %33 = vector.load %arg6[%c0_21, %c1_22] : memref<64x384xbf16, #tpu.memory_space<vmem>>, vector<64x256xbf16>
      %c0_23 = arith.constant 0 : index
      %c17 = arith.constant 17 : index
      %34 = vector.load %arg6[%c0_23, %c17] : memref<64x384xbf16, #tpu.memory_space<vmem>>, vector<64x256xbf16>
      %c0_24 = arith.constant 0 : index
      %c33 = arith.constant 33 : index
      %35 = vector.load %arg6[%c0_24, %c33] : memref<64x384xbf16, #tpu.memory_space<vmem>>, vector<64x256xbf16>
      %36 = tpu.concatenate %33, %34, %35 in 0 : vector<64x256xbf16>, vector<64x256xbf16>, vector<64x256xbf16> -> vector<192x256xbf16>
      %cst = arith.constant dense<0.000000e+00> : vector<64x256xf32>
      %37 = tpu.matmul %32, %36, %cst {dimension_numbers = #tpu.dot_dimension_numbers<[1], [0], [0], [1], [0, 0, 1, 1], [], []>} : vector<64x192xbf16>, vector<192x256xbf16>, vector<64x256xf32> -> vector<64x256xf32>
      %c0_25 = arith.constant 0 : index
      %c0_26 = arith.constant 0 : index
      %c0_27 = arith.constant 0 : index
      %c0_28 = arith.constant 0 : index
      %38 = vector.load %arg3[%c0_25, %c0_26, %c0_27, %c0_28] : memref<1x3x64x192xbf16, #tpu.memory_space<vmem>>, vector<1x1x64x192xbf16>
      %39 = vector.shape_cast %38 : vector<1x1x64x192xbf16> to vector<64x192xbf16>
      %c0_29 = arith.constant 0 : index
      %c0_30 = arith.constant 0 : index
      %40 = vector.load %arg6[%c0_29, %c0_30] : memref<64x384xbf16, #tpu.memory_space<vmem>>, vector<64x256xbf16>
      %c0_31 = arith.constant 0 : index
      %c16 = arith.constant 16 : index
      %41 = vector.load %arg6[%c0_31, %c16] : memref<64x384xbf16, #tpu.memory_space<vmem>>, vector<64x256xbf16>
      %c0_32 = arith.constant 0 : index
      %c32 = arith.constant 32 : index
      %42 = vector.load %arg6[%c0_32, %c32] : memref<64x384xbf16, #tpu.memory_space<vmem>>, vector<64x256xbf16>
      %43 = tpu.concatenate %40, %41, %42 in 0 : vector<64x256xbf16>, vector<64x256xbf16>, vector<64x256xbf16> -> vector<192x256xbf16>
      %cst_33 = arith.constant dense<0.000000e+00> : vector<64x256xf32>
      %44 = tpu.matmul %39, %43, %cst_33 {dimension_numbers = #tpu.dot_dimension_numbers<[1], [0], [0], [1], [0, 0, 1, 1], [], []>} : vector<64x192xbf16>, vector<192x256xbf16>, vector<64x256xf32> -> vector<64x256xf32>
      %45 = vector.broadcast %0 : vector<1x256xf32> to vector<64x256xf32>
      %46 = arith.mulf %45, %44 : vector<64x256xf32>
      %47 = arith.addf %37, %46 : vector<64x256xf32>
      %c0_34 = arith.constant 0 : index
      %c2 = arith.constant 2 : index
      %c0_35 = arith.constant 0 : index
      %c0_36 = arith.constant 0 : index
      %48 = vector.load %arg3[%c0_34, %c2, %c0_35, %c0_36] : memref<1x3x64x192xbf16, #tpu.memory_space<vmem>>, vector<1x1x64x192xbf16>
      %49 = vector.shape_cast %48 : vector<1x1x64x192xbf16> to vector<64x192xbf16>
      %c0_37 = arith.constant 0 : index
      %c2_38 = arith.constant 2 : index
      %50 = vector.load %arg6[%c0_37, %c2_38] : memref<64x384xbf16, #tpu.memory_space<vmem>>, vector<64x256xbf16>
      %c0_39 = arith.constant 0 : index
      %c18 = arith.constant 18 : index
      %51 = vector.load %arg6[%c0_39, %c18] : memref<64x384xbf16, #tpu.memory_space<vmem>>, vector<64x256xbf16>
      %c0_40 = arith.constant 0 : index
      %c34 = arith.constant 34 : index
      %52 = vector.load %arg6[%c0_40, %c34] : memref<64x384xbf16, #tpu.memory_space<vmem>>, vector<64x256xbf16>
      %53 = tpu.concatenate %50, %51, %52 in 0 : vector<64x256xbf16>, vector<64x256xbf16>, vector<64x256xbf16> -> vector<192x256xbf16>
      %cst_41 = arith.constant dense<0.000000e+00> : vector<64x256xf32>
      %54 = tpu.matmul %49, %53, %cst_41 {dimension_numbers = #tpu.dot_dimension_numbers<[1], [0], [0], [1], [0, 0, 1, 1], [], []>} : vector<64x192xbf16>, vector<192x256xbf16>, vector<64x256xf32> -> vector<64x256xf32>
      %55 = vector.broadcast %1 : vector<1x256xf32> to vector<64x256xf32>
      %56 = arith.mulf %55, %54 : vector<64x256xf32>
      %57 = arith.addf %47, %56 : vector<64x256xf32>
      %c19_i32 = arith.constant 19 : i32
      %58 = arith.cmpi slt, %arg1, %c19_i32 : i32
      %59 = arith.extui %58 : i1 to i32
      %c0_i32_42 = arith.constant 0 : i32
      %60 = arith.cmpi ne, %59, %c0_i32_42 : i32
      scf.if %60 {
        %cst_45 = arith.constant 0.000000e+00 : f32
        %64 = vector.broadcast %cst_45 : f32 to vector<64x256xf32>
        %65 = arith.maximumf %57, %64 : vector<64x256xf32>
        %66 = arith.truncf %65 : vector<64x256xf32> to vector<64x256xbf16>
        %c0_46 = arith.constant 0 : index
        %c17_47 = arith.constant 17 : index
        %67 = vector.load %arg7[%c0_46, %c17_47] : memref<64x384xbf16, #tpu.memory_space<vmem>>, vector<64x256xbf16>
        tpu.vector_store %arg7[%c0_46, %c17_47], %66 {strides = array<i32>} : memref<64x384xbf16, #tpu.memory_space<vmem>>, vector<64x256xbf16>,
      } else {
      }
      %c19_i32_43 = arith.constant 19 : i32
      %61 = arith.cmpi eq, %arg1, %c19_i32_43 : i32
      %62 = arith.extui %61 : i1 to i32
      %c0_i32_44 = arith.constant 0 : i32
      %63 = arith.cmpi ne, %62, %c0_i32_44 : i32
      scf.if %63 {
        %64 = vector.extract_strided_slice %57 {offsets = [0, 0], sizes = [3, 256], strides = [1, 1]} : vector<64x256xf32> to vector<3x256xf32>
        %c0_45 = arith.constant 0 : index
        %c0_46 = arith.constant 0 : index
        %c0_47 = arith.constant 0 : index
        %65 = vector.load %arg2[%c0_45, %c0_46, %c0_47] : memref<1x3x256xf32, #tpu.memory_space<vmem>>, vector<1x3x256xf32>
        %66 = vector.shape_cast %65 : vector<1x3x256xf32> to vector<3x256xf32>
        %67 = arith.addf %64, %66 : vector<3x256xf32>
        %c0_48 = arith.constant 0 : index
        %c0_49 = arith.constant 0 : index
        %c0_50 = arith.constant 0 : index
        %68 = vector.load %arg5[%c0_48, %c0_49, %c0_50] : memref<1x3x256xf32, #tpu.memory_space<vmem>>, vector<1x3x256xf32>
        %69 = vector.shape_cast %68 : vector<1x3x256xf32> to vector<3x256xf32>
        %70 = vector.shape_cast %67 : vector<3x256xf32> to vector<1x3x256xf32>
        tpu.vector_store %arg5[%c0_48, %c0_49, %c0_50], %70 {strides = array<i32>} : memref<1x3x256xf32, #tpu.memory_space<vmem>>, vector<1x3x256xf32>,
      } else {
      }
    } else {
    }
    %c2_i32_9 = arith.constant 2 : i32
    %c0_i32_10 = arith.constant 0 : i32
    %18 = arith.cmpi eq, %c2_i32_9, %c0_i32_10 : i32
    %c1_i32_11 = arith.constant 1 : i32
    %19 = arith.select %18, %c1_i32_11, %c2_i32_9 : i32
    %20 = arith.remsi %arg1, %19 : i32
    %c0_i32_12 = arith.constant 0 : i32
    %21 = arith.cmpi ne, %20, %c0_i32_12 : i32
    %c0_i32_13 = arith.constant 0 : i32
    %22 = arith.cmpi slt, %20, %c0_i32_13 : i32
    %c0_i32_14 = arith.constant 0 : i32
    %23 = arith.cmpi slt, %19, %c0_i32_14 : i32
    %24 = arith.xori %22, %23 : i1
    %25 = arith.andi %24, %21 : i1
    %26 = arith.addi %20, %19 : i32
    %27 = arith.select %25, %26, %20 : i32
    %c1_i32_15 = arith.constant 1 : i32
    %28 = arith.cmpi eq, %27, %c1_i32_15 : i32
    %29 = arith.extui %28 : i1 to i32
    %c0_i32_16 = arith.constant 0 : i32
    %30 = arith.cmpi ne, %29, %c0_i32_16 : i32
    scf.if %30 {
      %c0_17 = arith.constant 0 : index
      %c1_18 = arith.constant 1 : index
      %c0_19 = arith.constant 0 : index
      %c0_20 = arith.constant 0 : index
      %31 = vector.load %arg3[%c0_17, %c1_18, %c0_19, %c0_20] : memref<1x3x64x192xbf16, #tpu.memory_space<vmem>>, vector<1x1x64x192xbf16>
      %32 = vector.shape_cast %31 : vector<1x1x64x192xbf16> to vector<64x192xbf16>
      %c0_21 = arith.constant 0 : index
      %c1_22 = arith.constant 1 : index
      %33 = vector.load %arg7[%c0_21, %c1_22] : memref<64x384xbf16, #tpu.memory_space<vmem>>, vector<64x256xbf16>
      %c0_23 = arith.constant 0 : index
      %c17 = arith.constant 17 : index
      %34 = vector.load %arg7[%c0_23, %c17] : memref<64x384xbf16, #tpu.memory_space<vmem>>, vector<64x256xbf16>
      %c0_24 = arith.constant 0 : index
      %c33 = arith.constant 33 : index
      %35 = vector.load %arg7[%c0_24, %c33] : memref<64x384xbf16, #tpu.memory_space<vmem>>, vector<64x256xbf16>
      %36 = tpu.concatenate %33, %34, %35 in 0 : vector<64x256xbf16>, vector<64x256xbf16>, vector<64x256xbf16> -> vector<192x256xbf16>
      %cst = arith.constant dense<0.000000e+00> : vector<64x256xf32>
      %37 = tpu.matmul %32, %36, %cst {dimension_numbers = #tpu.dot_dimension_numbers<[1], [0], [0], [1], [0, 0, 1, 1], [], []>} : vector<64x192xbf16>, vector<192x256xbf16>, vector<64x256xf32> -> vector<64x256xf32>
      %c0_25 = arith.constant 0 : index
      %c0_26 = arith.constant 0 : index
      %c0_27 = arith.constant 0 : index
      %c0_28 = arith.constant 0 : index
      %38 = vector.load %arg3[%c0_25, %c0_26, %c0_27, %c0_28] : memref<1x3x64x192xbf16, #tpu.memory_space<vmem>>, vector<1x1x64x192xbf16>
      %39 = vector.shape_cast %38 : vector<1x1x64x192xbf16> to vector<64x192xbf16>
      %c0_29 = arith.constant 0 : index
      %c0_30 = arith.constant 0 : index
      %40 = vector.load %arg7[%c0_29, %c0_30] : memref<64x384xbf16, #tpu.memory_space<vmem>>, vector<64x256xbf16>
      %c0_31 = arith.constant 0 : index
      %c16 = arith.constant 16 : index
      %41 = vector.load %arg7[%c0_31, %c16] : memref<64x384xbf16, #tpu.memory_space<vmem>>, vector<64x256xbf16>
      %c0_32 = arith.constant 0 : index
      %c32 = arith.constant 32 : index
      %42 = vector.load %arg7[%c0_32, %c32] : memref<64x384xbf16, #tpu.memory_space<vmem>>, vector<64x256xbf16>
      %43 = tpu.concatenate %40, %41, %42 in 0 : vector<64x256xbf16>, vector<64x256xbf16>, vector<64x256xbf16> -> vector<192x256xbf16>
      %cst_33 = arith.constant dense<0.000000e+00> : vector<64x256xf32>
      %44 = tpu.matmul %39, %43, %cst_33 {dimension_numbers = #tpu.dot_dimension_numbers<[1], [0], [0], [1], [0, 0, 1, 1], [], []>} : vector<64x192xbf16>, vector<192x256xbf16>, vector<64x256xf32> -> vector<64x256xf32>
      %45 = vector.broadcast %0 : vector<1x256xf32> to vector<64x256xf32>
      %46 = arith.mulf %45, %44 : vector<64x256xf32>
      %47 = arith.addf %37, %46 : vector<64x256xf32>
      %c0_34 = arith.constant 0 : index
      %c2 = arith.constant 2 : index
      %c0_35 = arith.constant 0 : index
      %c0_36 = arith.constant 0 : index
      %48 = vector.load %arg3[%c0_34, %c2, %c0_35, %c0_36] : memref<1x3x64x192xbf16, #tpu.memory_space<vmem>>, vector<1x1x64x192xbf16>
      %49 = vector.shape_cast %48 : vector<1x1x64x192xbf16> to vector<64x192xbf16>
      %c0_37 = arith.constant 0 : index
      %c2_38 = arith.constant 2 : index
      %50 = vector.load %arg7[%c0_37, %c2_38] : memref<64x384xbf16, #tpu.memory_space<vmem>>, vector<64x256xbf16>
      %c0_39 = arith.constant 0 : index
      %c18 = arith.constant 18 : index
      %51 = vector.load %arg7[%c0_39, %c18] : memref<64x384xbf16, #tpu.memory_space<vmem>>, vector<64x256xbf16>
      %c0_40 = arith.constant 0 : index
      %c34 = arith.constant 34 : index
      %52 = vector.load %arg7[%c0_40, %c34] : memref<64x384xbf16, #tpu.memory_space<vmem>>, vector<64x256xbf16>
      %53 = tpu.concatenate %50, %51, %52 in 0 : vector<64x256xbf16>, vector<64x256xbf16>, vector<64x256xbf16> -> vector<192x256xbf16>
      %cst_41 = arith.constant dense<0.000000e+00> : vector<64x256xf32>
      %54 = tpu.matmul %49, %53, %cst_41 {dimension_numbers = #tpu.dot_dimension_numbers<[1], [0], [0], [1], [0, 0, 1, 1], [], []>} : vector<64x192xbf16>, vector<192x256xbf16>, vector<64x256xf32> -> vector<64x256xf32>
      %55 = vector.broadcast %1 : vector<1x256xf32> to vector<64x256xf32>
      %56 = arith.mulf %55, %54 : vector<64x256xf32>
      %57 = arith.addf %47, %56 : vector<64x256xf32>
      %c19_i32 = arith.constant 19 : i32
      %58 = arith.cmpi slt, %arg1, %c19_i32 : i32
      %59 = arith.extui %58 : i1 to i32
      %c0_i32_42 = arith.constant 0 : i32
      %60 = arith.cmpi ne, %59, %c0_i32_42 : i32
      scf.if %60 {
        %cst_45 = arith.constant 0.000000e+00 : f32
        %64 = vector.broadcast %cst_45 : f32 to vector<64x256xf32>
        %65 = arith.maximumf %57, %64 : vector<64x256xf32>
        %66 = arith.truncf %65 : vector<64x256xf32> to vector<64x256xbf16>
        %c0_46 = arith.constant 0 : index
        %c17_47 = arith.constant 17 : index
        %67 = vector.load %arg6[%c0_46, %c17_47] : memref<64x384xbf16, #tpu.memory_space<vmem>>, vector<64x256xbf16>
        tpu.vector_store %arg6[%c0_46, %c17_47], %66 {strides = array<i32>} : memref<64x384xbf16, #tpu.memory_space<vmem>>, vector<64x256xbf16>,
      } else {
      }
      %c19_i32_43 = arith.constant 19 : i32
      %61 = arith.cmpi eq, %arg1, %c19_i32_43 : i32
      %62 = arith.extui %61 : i1 to i32
      %c0_i32_44 = arith.constant 0 : i32
      %63 = arith.cmpi ne, %62, %c0_i32_44 : i32
      scf.if %63 {
        %64 = vector.extract_strided_slice %57 {offsets = [0, 0], sizes = [3, 256], strides = [1, 1]} : vector<64x256xf32> to vector<3x256xf32>
        %c0_45 = arith.constant 0 : index
        %c0_46 = arith.constant 0 : index
        %c0_47 = arith.constant 0 : index
        %65 = vector.load %arg2[%c0_45, %c0_46, %c0_47] : memref<1x3x256xf32, #tpu.memory_space<vmem>>, vector<1x3x256xf32>
        %66 = vector.shape_cast %65 : vector<1x3x256xf32> to vector<3x256xf32>
        %67 = arith.addf %64, %66 : vector<3x256xf32>
        %c0_48 = arith.constant 0 : index
        %c0_49 = arith.constant 0 : index
        %c0_50 = arith.constant 0 : index
        %68 = vector.load %arg5[%c0_48, %c0_49, %c0_50] : memref<1x3x256xf32, #tpu.memory_space<vmem>>, vector<1x3x256xf32>
        %69 = vector.shape_cast %68 : vector<1x3x256xf32> to vector<3x256xf32>
        %70 = vector.shape_cast %67 : vector<3x256xf32> to vector<1x3x256xf32>
        tpu.vector_store %arg5[%c0_48, %c0_49, %c0_50], %70 {strides = array<i32>} : memref<1x3x256xf32, #tpu.memory_space<vmem>>, vector<1x3x256xf32>,
      } else {
      }
    } else {
    }
    return
  }
  func.func @transform_0(%arg0: i32, %arg1: i32) -> (i32, i32, i32) {
    %c0_i32 = arith.constant 0 : i32
    %c0_i32_0 = arith.constant 0 : i32
    %c0_i32_1 = arith.constant 0 : i32
    return %arg0, %c0_i32, %c0_i32_0 : i32, i32, i32
  }
  func.func @transform_1(%arg0: i32, %arg1: i32) -> (i32, i32, i32, i32) {
    %c0_i32 = arith.constant 0 : i32
    %c0_i32_0 = arith.constant 0 : i32
    %c0_i32_1 = arith.constant 0 : i32
    %c0_i32_2 = arith.constant 0 : i32
    return %arg1, %c0_i32, %c0_i32_0, %c0_i32_1 : i32, i32, i32, i32
  }
  func.func @transform_2(%arg0: i32, %arg1: i32) -> (i32, i32) {
    %c0_i32 = arith.constant 0 : i32
    %c0_i32_0 = arith.constant 0 : i32
    %c0_i32_1 = arith.constant 0 : i32
    return %c0_i32, %c0_i32_0 : i32, i32
  }
  func.func @transform_3(%arg0: i32, %arg1: i32) -> (i32, i32, i32) {
    %c0_i32 = arith.constant 0 : i32
    %c0_i32_0 = arith.constant 0 : i32
    %c0_i32_1 = arith.constant 0 : i32
    return %arg0, %c0_i32, %c0_i32_0 : i32, i32, i32
  }
}

</mosaic_0001>

<llo_original>
// kernel: vdsr_forward.1
$region0: #{vdsr_forward.1}
  #allocation0 [shape = 'u32[]', space=smem, size = 0x4, offset = 0x4, fixed_abs, tag = 'smem constant byte address 0x4 - core index']
  #allocation1 [shape = 'u32[144,128]{1,0:T(1,128)}', space=vmem, size = 0x12000, scoped, tag = 'internal scratch']
  #allocation2 [shape = 'bf16[64,384]{1,0:T(16,128)(2,1)}', space=vmem, size = 0xc000, scoped, tag = 'scratch operand']
  #allocation3 [shape = 'bf16[64,384]{1,0:T(16,128)(2,1)}', space=vmem, size = 0xc000, scoped, tag = 'scratch operand']
  %s0 = inlined_call_operand.hbm [shape: f32[2,3,256], index: 0, kind: input, shape index: {}]
  %s1 = inlined_call_operand.hbm [shape: bf16[20,3,64,192], index: 1, kind: input, shape index: {}]
  %s2 = inlined_call_operand.hbm [shape: f32[2,256], index: 2, kind: input, shape index: {}]
  %s3 = inlined_call_operand.hbm [shape: f32[2,3,256], index: 3, kind: output, shape index: {}]
  %s4 = sld [smem:[#allocation0]]
  $region85: #{vdsr_forward.1} parent=0
    _
  %s6 = ssub.s32 1, %s4
  %s7 = scalar_select 0, %s6, %s4
  $region1: #{vdsr_forward.1} parent=0
    #allocation4 [shape = 'u8[8192]{0}', space=vmem, size = 0x2000, scoped, tag = 'input window, operand 0']
    #allocation5 [shape = 's32[2]{0}', space=sflag, size = 0x8, scoped, tag = 'scoped memory for vdsr_forward.1']
    #allocation6 [shape = 's32[2]{0}', space=sflag, size = 0x8, scoped, tag = 'scoped memory for vdsr_forward.1']
    #allocation7 [shape = 'u8[196608]{0}', space=vmem, size = 0x30000, scoped, tag = 'input window, operand 1']
    #allocation8 [shape = 's32[2]{0}', space=sflag, size = 0x8, scoped, tag = 'scoped memory for vdsr_forward.1']
    #allocation9 [shape = 'u8[2048]{0}', space=vmem, size = 0x800, scoped, tag = 'input window, operand 2, single buffered']
    #allocation10 [shape = 'u8[8192]{0}', space=vmem, size = 0x2000, scoped, tag = 'output window, operand 0']
    %8 = vsyncpa [#allocation5], 0
    %s9 = scalar_lea.sflag [#allocation5], 1
    %10 = vsyncpa %s9, 0
    %11 = vsyncpa [#allocation8], 0
    %s12 = scalar_lea.sflag [#allocation8], 1
    %13 = vsyncpa %s12, 0
    %14 = vsyncpa [#allocation6], 0
    %s15 = scalar_lea.sflag [#allocation6], 1
    %16 = vsyncpa %s15, 0
    loop: start=0, step=1, limit=42
    $region2: #{vdsr_forward.1} parent=1 // loop_pre_header
      _
    $region3: #{vdsr_forward.1} parent=1 // loop_header
      %s18 = sphi 0, %s22
      %p19 = scmp.ge.s32.totalorder %s18, 42
      %s25 = sphi 0, %s37
      %s26 = sphi 0, %s33
      %s27 = sphi 0, %s25
      %s28 = sphi 0, %s26
      %s29 = sphi 0, %s27
      %s30 = sphi 0, %s28
      %s40 = sphi 0, %s42
      %s43 = sphi 0, %s40
      %s44 = sphi 0, %s43
      %s60 = sphi 0, %s44
      %s66 = sphi 0, %s68
      %s69 = sphi 0, %s66
      %s70 = sphi 0, %s69
      %s86 = sphi 0, %s70
      %s90 = sphi 0, %s90
      %s92 = sphi 0, %s90
      %s93 = sphi 0, %s92
      %s107 = sphi 0, %s93
      %s113 = sphi 0, %s115
      %s116 = sphi 0, %s113
      %s117 = sphi 0, %s116
      %s133 = sphi 0, %s117
    $region4: #{vdsr_forward.1} parent=1 // loop_header_branch
      %21 = sbr.rel (%p19) target = $region8
    $region5: #{vdsr_forward.1} parent=1 // loop_body
      %s23 = ssub.s32 %s18, 1
      %s24 = ssub.s32 %s18, 2
      %s31 = sadd.s32 1, %s26
      %p32 = scmp.ge.s32.totalorder %s31, 20
      %s33 = scalar_select %p32, 0, %s31
      %s34 = sadd.s32 1, %s25
      %s35 = scalar_select %p32, %s34, %s25
      %p36 = scmp.ge.s32.totalorder %s35, 2
      %s37 = scalar_select %p36, 0, %s35
      %s38 = ssub.s32 %s25, %s37
      %p39 = scmp.eq.s32.totalorder %s38, 0
      %s41 = sadd.s32 %s40, 1
      %s42 = scalar_select %p39, %s40, %s41
      %p45 = pneg %p39
      %p46 = scmp.eq.s32.totalorder %s18, 39
      %p47 = por %p45, %p46
      %p48 = scmp.ne.s32.totalorder %s40, %s43
      %p49 = scmp.eq.s32.totalorder %s18, 0
      %p50 = por %p48, %p49
      %p51 = scmp.ne.s32.totalorder %s40, %s43
      %p52 = scmp.eq.s32.totalorder %s23, 39
      %p53 = por %p51, %p52
      %p54 = scmp.ne.s32.totalorder %s43, %s44
      %p55 = scmp.eq.s32.totalorder %s23, 0
      %p56 = por %p54, %p55
      %p57 = scmp.ne.s32.totalorder %s43, %s44
      %p58 = scmp.eq.s32.totalorder %s24, 39
      %p59 = por %p57, %p58
      %p61 = scmp.ne.s32.totalorder %s44, %s60
      %p62 = scmp.eq.s32.totalorder %s24, 0
      %p63 = por %p61, %p62
      %s64 = ssub.s32 %s26, %s33
      %p65 = scmp.eq.s32.totalorder %s64, 0
      %s67 = sadd.s32 %s66, 1
      %s68 = scalar_select %p65, %s66, %s67
      %p71 = pneg %p65
      %p72 = scmp.eq.s32.totalorder %s18, 39
      %p73 = por %p71, %p72
      %p74 = scmp.ne.s32.totalorder %s66, %s69
      %p75 = scmp.eq.s32.totalorder %s18, 0
      %p76 = por %p74, %p75
      %p77 = scmp.ne.s32.totalorder %s66, %s69
      %p78 = scmp.eq.s32.totalorder %s23, 39
      %p79 = por %p77, %p78
      %p80 = scmp.ne.s32.totalorder %s69, %s70
      %p81 = scmp.eq.s32.totalorder %s23, 0
      %p82 = por %p80, %p81
      %p83 = scmp.ne.s32.totalorder %s69, %s70
      %p84 = scmp.eq.s32.totalorder %s24, 39
      %p85 = por %p83, %p84
      %p87 = scmp.ne.s32.totalorder %s70, %s86
      %p88 = scmp.eq.s32.totalorder %s24, 0
      %p89 = por %p87, %p88
      %s91 = sadd.s32 %s90, 1
      %p94 = scmp.eq.s32.totalorder %s18, 39
      %p95 = scmp.ne.s32.totalorder %s90, %s92
      %p96 = scmp.eq.s32.totalorder %s18, 0
      %p97 = por %p95, %p96
      %p98 = scmp.ne.s32.totalorder %s90, %s92
      %p99 = scmp.eq.s32.totalorder %s23, 39
      %p100 = por %p98, %p99
      %p101 = scmp.ne.s32.totalorder %s92, %s93
      %p102 = scmp.eq.s32.totalorder %s23, 0
      %p103 = por %p101, %p102
      %p104 = scmp.ne.s32.totalorder %s92, %s93
      %p105 = scmp.eq.s32.totalorder %s24, 39
      %p106 = por %p104, %p105
      %p108 = scmp.ne.s32.totalorder %s93, %s107
      %p109 = scmp.eq.s32.totalorder %s24, 0
      %p110 = por %p108, %p109
      %s111 = ssub.s32 %s25, %s37
      %p112 = scmp.eq.s32.totalorder %s111, 0
      %s114 = sadd.s32 %s113, 1
      %s115 = scalar_select %p112, %s113, %s114
      %p118 = pneg %p112
      %p119 = scmp.eq.s32.totalorder %s18, 39
      %p120 = por %p118, %p119
      %p121 = scmp.ne.s32.totalorder %s113, %s116
      %p122 = scmp.eq.s32.totalorder %s18, 0
      %p123 = por %p121, %p122
      %p124 = scmp.ne.s32.totalorder %s113, %s116
      %p125 = scmp.eq.s32.totalorder %s23, 39
      %p126 = por %p124, %p125
      %p127 = scmp.ne.s32.totalorder %s116, %s117
      %p128 = scmp.eq.s32.totalorder %s23, 0
      %p129 = por %p127, %p128
      %p130 = scmp.ne.s32.totalorder %s116, %s117
      %p131 = scmp.eq.s32.totalorder %s24, 39
      %p132 = por %p130, %p131
      %p134 = scmp.ne.s32.totalorder %s117, %s133
      %p135 = scmp.eq.s32.totalorder %s24, 0
      %p136 = por %p134, %p135
      %p137 = scmp.le.s32.totalorder 1, %s18
      %p138 = scmp.lt.s32.totalorder %s18, 41
      %p139 = pnand %p137, %p138
      %p140 = pneg %p139
      // Predicated region
      $region9: #{vdsr_forward.1} parent=5 // pred_check
        _
      $region10: #{vdsr_forward.1} parent=5 // pred_check_branch
        %142 = sbr.rel (%p139) target = $region12
      $region11: #{vdsr_forward.1} parent=5 // pred_region
        %s143 = ssub.s32 %s18, 1
        // Predicated region
        $region13: #{vdsr_forward.1} parent=11 // pred_check
          %p144 = pneg %p103
        $region14: #{vdsr_forward.1} parent=11 // pred_check_branch
          %146 = sbr.rel (%p144) target = $region16
        $region15: #{vdsr_forward.1} parent=11 // pred_region
          %s148 = ssub.s32 64, 64
          %149 = vsyncadd [#allocation8], %s148
          %s151 = sshll.u32 [#allocation9], 4
          %s152 = int_to_ptr.vmem [resolvable:$true] %s151
          %154 = dma.hbm_to_vmem [thread:$0]  %s2, 64, %s152, [#allocation8]
        $region16: #{vdsr_forward.1} parent=11 // pred_fallthru
          _
      $region12: #{vdsr_forward.1} parent=5 // pred_fallthru
        _
      %p155 = scmp.lt.s32.totalorder %s18, 40
      // Predicated region
      $region17: #{vdsr_forward.1} parent=5 // pred_check
        %p156 = pneg %p155
      $region18: #{vdsr_forward.1} parent=5 // pred_check_branch
        %158 = sbr.rel (%p156) target = $region20
      $region19: #{vdsr_forward.1} parent=5 // pred_region
        // Predicated region
        $region21: #{vdsr_forward.1} parent=19 // pred_check
          %p159 = pneg %p50
        $region22: #{vdsr_forward.1} parent=19 // pred_check_branch
          %161 = sbr.rel (%p159) target = $region24
        $region23: #{vdsr_forward.1} parent=19 // pred_region
          %s162 = sand.u32 %s40, 1
          %s163 = scalar_lea.sflag [#allocation5], %s162
          %s164 = sand.u32 %s40, 1
          %s165 = smul.addr %s164, 8
          %s166 = scalar_lea.vmem [#allocation4], %s165
          %s168 = ssub.s32 128, 128
          %169 = vsyncadd %s163, %s168
          %s170 = smul.addr %s25, 2
          %s171 = smul.addr %s170, 64
          %s172 = scalar_lea.hbm %s0, %s171
          %s174 = sshll.u32 %s166, 4
          %s175 = int_to_ptr.vmem [resolvable:$true] %s174
          %177 = dma.hbm_to_vmem [thread:$0]  %s172, 128, %s175, %s163
        $region24: #{vdsr_forward.1} parent=19 // pred_fallthru
          _
        // Predicated region
        $region25: #{vdsr_forward.1} parent=19 // pred_check
          %p178 = pneg %p76
        $region26: #{vdsr_forward.1} parent=19 // pred_check_branch
          %180 = sbr.rel (%p178) target = $region28
        $region27: #{vdsr_forward.1} parent=19 // pred_region
          %s181 = sand.u32 %s18, 1
          %s182 = scalar_lea.sflag [#allocation8], %s181
          %s183 = sand.u32 %s66, 1
          %s184 = smul.addr %s183, 192
          %s185 = scalar_lea.vmem [#allocation7], %s184
          %s187 = ssub.s32 3072, 3072
          %188 = vsyncadd %s182, %s187
          %s189 = smul.addr %s26, 48
          %s190 = smul.addr %s189, 64
          %s191 = scalar_lea.hbm %s1, %s190
          %s192 = sshll.u32 %s185, 4
          %s193 = int_to_ptr.vmem [resolvable:$true] %s192
          %198 = dma.hbm_to_vmem [thread:$0]  %s191, 3072, %s193, %s182, 128, 128, 8
        $region28: #{vdsr_forward.1} parent=19 // pred_fallthru
          _
      $region20: #{vdsr_forward.1} parent=5 // pred_fallthru
        _
      %p199 = scmp.le.s32.totalorder 1, %s18
      %p200 = scmp.lt.s32.totalorder %s18, 41
      %p201 = pnand %p199, %p200
      %p202 = pneg %p201
      // Predicated region
      $region29: #{vdsr_forward.1} parent=5 // pred_check
        _
      $region30: #{vdsr_forward.1} parent=5 // pred_check_branch
        %204 = sbr.rel (%p201) target = $region32
      $region31: #{vdsr_forward.1} parent=5 // pred_region
        %s205 = ssub.s32 %s18, 1
        %s206 = sand.u32 %s43, 1
        %s207 = scalar_lea.sflag [#allocation5], %s206
        %s208 = sand.u32 %s43, 1
        %s209 = smul.addr %s208, 8
        %s210 = scalar_lea.vmem [#allocation4], %s209
        // Predicated region
        $region33: #{vdsr_forward.1} parent=31 // pred_check
          %p211 = pneg %p56
        $region34: #{vdsr_forward.1} parent=31 // pred_check_branch
          %213 = sbr.rel (%p211) target = $region36
        $region35: #{vdsr_forward.1} parent=31 // pred_region
          %214 = dma.done %s207, 128
        $region36: #{vdsr_forward.1} parent=31 // pred_fallthru
          _
        %s215 = sand.u32 %s23, 1
        %s216 = scalar_lea.sflag [#allocation8], %s215
        %s217 = sand.u32 %s69, 1
        %s218 = smul.addr %s217, 192
        %s219 = scalar_lea.vmem [#allocation7], %s218
        // Predicated region
        $region37: #{vdsr_forward.1} parent=31 // pred_check
          %p220 = pneg %p82
        $region38: #{vdsr_forward.1} parent=31 // pred_check_branch
          %222 = sbr.rel (%p220) target = $region40
        $region39: #{vdsr_forward.1} parent=31 // pred_region
          %223 = dma.done %s216, 3072
        $region40: #{vdsr_forward.1} parent=31 // pred_fallthru
          _
        // Predicated region
        $region41: #{vdsr_forward.1} parent=31 // pred_check
          %p224 = pneg %p103
        $region42: #{vdsr_forward.1} parent=31 // pred_check_branch
          %226 = sbr.rel (%p224) target = $region44
        $region43: #{vdsr_forward.1} parent=31 // pred_region
          %227 = dma.done [#allocation8], 64
        $region44: #{vdsr_forward.1} parent=31 // pred_fallthru
          _
        %s228 = sand.u32 %s43, 1
        %s229 = scalar_lea.sflag [#allocation5], %s228
        %s230 = sand.u32 %s43, 1
        %s231 = smul.addr %s230, 8
        %s232 = scalar_lea.vmem [#allocation4], %s231
        %p233 = pneg %p56
        %p234 = pneg %p53
        %s235 = sand.u32 %s23, 1
        %s236 = scalar_lea.sflag [#allocation8], %s235
        %s237 = sand.u32 %s69, 1
        %s238 = smul.addr %s237, 192
        %s239 = scalar_lea.vmem [#allocation7], %s238
        %p240 = pneg %p82
        %p241 = pneg %p79
        %p242 = pneg %p103
        %p243 = pneg %p100
        %p244 = pneg %p129
        %p245 = pneg %p126
        %s246 = sand.u32 %s116, 1
        %s247 = scalar_lea.sflag [#allocation6], %s246
        %s248 = sand.u32 %s116, 1
        %s249 = smul.addr %s248, 8
        %s250 = scalar_lea.vmem [#allocation10], %s249
        %v252 = vld [vmem:[#allocation9] ss:$2 sm:$0x3]
        %s253 = scalar_lea.vmem [#allocation9], 1
        %v254 = vld [vmem:[%s253] ss:$2 sm:$0x3]
        %p255 = scmp.eq.s32.totalorder %s28, 0
        // Predicated region
        $region45: #{vdsr_forward.1} parent=31 // pred_check
          %p256 = pneg %p255
        $region46: #{vdsr_forward.1} parent=31 // pred_check_branch
          %258 = sbr.rel (%p256) target = $region48
        $region47: #{vdsr_forward.1} parent=31 // pred_region
          %259 = vst [vmem:[#allocation2] sm:$0xff] 0
          %260 = vst [vmem:[#allocation2 + $0x8] sm:$0xff] 0
          %261 = vst [vmem:[#allocation2 + $0x10] sm:$0xff] 0
          %262 = vst [vmem:[#allocation2 + $0x18] sm:$0xff] 0
          %263 = vst [vmem:[#allocation2 + $0x20] sm:$0xff] 0
          %264 = vst [vmem:[#allocation2 + $0x28] sm:$0xff] 0
          %265 = vst [vmem:[#allocation2 + $0x30] sm:$0xff] 0
          %266 = vst [vmem:[#allocation2 + $0x38] sm:$0xff] 0
          %267 = vst [vmem:[#allocation2 + $0x40] sm:$0xff] 0
          %268 = vst [vmem:[#allocation2 + $0x48] sm:$0xff] 0
          %269 = vst [vmem:[#allocation2 + $0x50] sm:$0xff] 0
          %270 = vst [vmem:[#allocation2 + $0x58] sm:$0xff] 0
          %271 = vst [vmem:[#allocation3] sm:$0xff] 0
          %272 = vst [vmem:[#allocation3 + $0x8] sm:$0xff] 0
          %273 = vst [vmem:[#allocation3 + $0x10] sm:$0xff] 0
          %274 = vst [vmem:[#allocation3 + $0x18] sm:$0xff] 0
          %275 = vst [vmem:[#allocation3 + $0x20] sm:$0xff] 0
          %276 = vst [vmem:[#allocation3 + $0x28] sm:$0xff] 0
          %277 = vst [vmem:[#allocation3 + $0x30] sm:$0xff] 0
          %278 = vst [vmem:[#allocation3 + $0x38] sm:$0xff] 0
          %279 = vst [vmem:[#allocation3 + $0x40] sm:$0xff] 0
          %280 = vst [vmem:[#allocation3 + $0x48] sm:$0xff] 0
          %281 = vst [vmem:[#allocation3 + $0x50] sm:$0xff] 0
          %282 = vst [vmem:[#allocation3 + $0x58] sm:$0xff] 0
          %v283 = vld [vmem:[%s210] sm:$0x77]
          %v285 = vcombine.high %v283, %v283
          %v287 = vpack.c.bf16 %v283, %v283
          %v288 = vpack.c.bf16 %v285, %v285
          %291 = vrot.lane.b32.xlu0 %v287, 17
          %v292 = vpop.permute.xlu0 %291
          %293 = vrot.lane.b32.xlu0 %v288, 17
          %v294 = vpop.permute.xlu0 %293
          %vm295 = vcmask 138240
          %v296 = vsel %vm295, %v292, %v294
          %vm300 = vcmask 1041544
          %vm301 = vsmask.f32 1280
          %vm302 = vmand %vm300, %vm301
          %v303 = vld [vmem:[#allocation2] sm:$0x3]
          %v304 = vsel %vm302, %v292, %v303
          %305 = vst [vmem:[#allocation2] sm:$0x3] %v304
          %vm306 = vcmask 1041408
          %vm307 = vmand %vm306, %vm301
          %v308 = vld [vmem:[#allocation2 + $0x8] sm:$0x3]
          %v309 = vsel %vm307, %v296, %v308
          %310 = vst [vmem:[#allocation2 + $0x8] sm:$0x3] %v309
          %vm311 = vcmask 132096
          %vm312 = vmand %vm311, %vm301
          %v313 = vld [vmem:[#allocation2 + $0x10] sm:$0x3]
          %v314 = vsel %vm312, %v294, %v313
          %315 = vst [vmem:[#allocation2 + $0x10] sm:$0x3] %v314
        $region48: #{vdsr_forward.1} parent=31 // pred_fallthru
          _
        %p316 = scmp.lt.s32.totalorder %s28, 0
        %s317 = ssub.s32 0, %s28
        %s318 = scalar_select %p316, %s317, %s28
        %s319 = sand.u32 %s318, 1
        %s320 = ssub.s32 0, %s319
        %s321 = scalar_select %p316, %s320, %s319
        %p322 = scmp.ne.s32.totalorder %s321, 0
        %p323 = scmp.lt.s32.totalorder %s321, 0
        %p324 = pnand %p323, %p322
        %p325 = pneg %p324
        %s326 = sadd.s32 %s321, 2
        %s327 = scalar_select %p325, %s326, %s321
        %p328 = scmp.eq.s32.totalorder %s327, 0
        // Predicated region
        $region49: #{vdsr_forward.1} parent=31 // pred_check
          %p329 = pneg %p328
        $region50: #{vdsr_forward.1} parent=31 // pred_check_branch
          %331 = sbr.rel (%p329) target = $region52
        $region51: #{vdsr_forward.1} parent=31 // pred_region
          %s332 = scalar_lea.vmem %s219, 64 [#allocation7]
          %v333 = vld [vmem:[%s332] sm:$0xff]
          %v334 = vld [vmem:[%s332 + $0x8] sm:$0xff]
          %v335 = vld [vmem:[%s332 + $0x10] sm:$0xff]
          %v336 = vld [vmem:[%s332 + $0x18] sm:$0xff]
          %v337 = vld [vmem:[%s332 + $0x20] sm:$0xff]
          %v338 = vld [vmem:[%s332 + $0x28] sm:$0xff]
          %v339 = vld [vmem:[%s332 + $0x30] sm:$0xff]
          %v340 = vld [vmem:[%s332 + $0x38] sm:$0xff]
          %v341 = vld [vmem:[#allocation2] sm:$0xff]
          %v342 = vld [vmem:[#allocation2 + $0x8] sm:$0xff]
          %v343 = vld [vmem:[#allocation2 + $0x10] sm:$0xff]
          %v344 = vld [vmem:[#allocation2 + $0x18] sm:$0xff]
          %v345 = vld [vmem:[#allocation2 + $0x20] sm:$0xff]
          %v346 = vld [vmem:[#allocation2 + $0x28] sm:$0xff]
          %v347 = vld [vmem:[#allocation2 + $0x30] sm:$0xff]
          %v348 = vld [vmem:[#allocation2 + $0x38] sm:$0xff]
          %v349 = vld [vmem:[#allocation2 + $0x40] sm:$0xff]
          %v350 = vld [vmem:[#allocation2 + $0x48] sm:$0xff]
          %v351 = vld [vmem:[#allocation2 + $0x50] sm:$0xff]
          %v352 = vld [vmem:[#allocation2 + $0x58] sm:$0xff]
          %365 = vrot.lane.b32.xlu0 %v341, 112
          %v366 = vpop.permute.xlu0 %365
          %367 = vrot.lane.b32.xlu0 %v342, 112
          %v368 = vpop.permute.xlu0 %367
          %369 = vrot.lane.b32.xlu0 %v343, 112
          %v370 = vpop.permute.xlu0 %369
          %371 = vrot.lane.b32.xlu0 %v344, 112
          %v372 = vpop.permute.xlu0 %371
          %373 = vrot.lane.b32.xlu0 %v345, 112
          %v374 = vpop.permute.xlu0 %373
          %375 = vrot.lane.b32.xlu0 %v346, 112
          %v376 = vpop.permute.xlu0 %375
          %377 = vrot.lane.b32.xlu0 %v347, 112
          %v378 = vpop.permute.xlu0 %377
          %379 = vrot.lane.b32.xlu0 %v348, 112
          %v380 = vpop.permute.xlu0 %379
          %381 = vrot.lane.b32.xlu0 %v349, 112
          %v382 = vpop.permute.xlu0 %381
          %383 = vrot.lane.b32.xlu0 %v350, 112
          %v384 = vpop.permute.xlu0 %383
          %385 = vrot.lane.b32.xlu0 %v351, 112
          %v386 = vpop.permute.xlu0 %385
          %387 = vrot.lane.b32.xlu0 %v352, 112
          %v388 = vpop.permute.xlu0 %387
          %vm389 = vcmask 916480
          %v390 = vsel %vm389, %v366, %v368
          %v391 = vsel %vm389, %v368, %v370
          %v392 = vsel %vm389, %v372, %v374
          %v393 = vsel %vm389, %v374, %v376
          %v394 = vsel %vm389, %v378, %v380
          %v395 = vsel %vm389, %v380, %v382
          %v396 = vsel %vm389, %v384, %v386
          %v397 = vsel %vm389, %v386, %v388
          %398 = vrot.lane.b32.xlu0 %v341, 96
          %v399 = vpop.permute.xlu0 %398
          %400 = vrot.lane.b32.xlu0 %v342, 96
          %v401 = vpop.permute.xlu0 %400
          %402 = vrot.lane.b32.xlu0 %v343, 96
          %v403 = vpop.permute.xlu0 %402
          %404 = vrot.lane.b32.xlu0 %v344, 96
          %v405 = vpop.permute.xlu0 %404
          %406 = vrot.lane.b32.xlu0 %v345, 96
          %v407 = vpop.permute.xlu0 %406
          %408 = vrot.lane.b32.xlu0 %v346, 96
          %v409 = vpop.permute.xlu0 %408
          %410 = vrot.lane.b32.xlu0 %v347, 96
          %v411 = vpop.permute.xlu0 %410
          %412 = vrot.lane.b32.xlu0 %v348, 96
          %v413 = vpop.permute.xlu0 %412
          %414 = vrot.lane.b32.xlu0 %v349, 96
          %v415 = vpop.permute.xlu0 %414
          %416 = vrot.lane.b32.xlu0 %v350, 96
          %v417 = vpop.permute.xlu0 %416
          %418 = vrot.lane.b32.xlu0 %v351, 96
          %v419 = vpop.permute.xlu0 %418
          %420 = vrot.lane.b32.xlu0 %v352, 96
          %v421 = vpop.permute.xlu0 %420
          %vm422 = vcmask 785408
          %v423 = vsel %vm422, %v399, %v401
          %v424 = vsel %vm422, %v401, %v403
          %v425 = vsel %vm422, %v405, %v407
          %v426 = vsel %vm422, %v407, %v409
          %v427 = vsel %vm422, %v411, %v413
          %v428 = vsel %vm422, %v413, %v415
          %v429 = vsel %vm422, %v417, %v419
          %v430 = vsel %vm422, %v419, %v421
          %v431 = vld [vmem:[%s219] sm:$0xff]
          %v432 = vld [vmem:[%s219 + $0x8] sm:$0xff]
          %v433 = vld [vmem:[%s219 + $0x10] sm:$0xff]
          %v434 = vld [vmem:[%s219 + $0x18] sm:$0xff]
          %v435 = vld [vmem:[%s219 + $0x20] sm:$0xff]
          %v436 = vld [vmem:[%s219 + $0x28] sm:$0xff]
          %v437 = vld [vmem:[%s219 + $0x30] sm:$0xff]
          %v438 = vld [vmem:[%s219 + $0x38] sm:$0xff]
          %v439 = vld [vmem:[#allocation2] sm:$0xff]
          %v440 = vld [vmem:[#allocation2 + $0x8] sm:$0xff]
          %v441 = vld [vmem:[#allocation2 + $0x18] sm:$0xff]
          %v442 = vld [vmem:[#allocation2 + $0x20] sm:$0xff]
          %v443 = vld [vmem:[#allocation2 + $0x30] sm:$0xff]
          %v444 = vld [vmem:[#allocation2 + $0x38] sm:$0xff]
          %v445 = vld [vmem:[#allocation2 + $0x48] sm:$0xff]
          %v446 = vld [vmem:[#allocation2 + $0x50] sm:$0xff]
          %v471 = vunpack.c.l.b16 %v431
          %v472 = vunpack.c.h.b16 %v431
          %v473 = vunpack.c.l.b16 %v432
          %v474 = vunpack.c.h.b16 %v432
          %v475 = vunpack.c.l.b16 %v433
          %v476 = vunpack.c.h.b16 %v433
          %v477 = vunpack.c.l.b16 %v434
          %v478 = vunpack.c.h.b16 %v434
          %v479 = vunpack.c.l.b16 %v435
          %v480 = vunpack.c.h.b16 %v435
          %v481 = vunpack.c.l.b16 %v436
          %v482 = vunpack.c.h.b16 %v436
          %v483 = vunpack.c.l.b16 %v437
          %v484 = vunpack.c.h.b16 %v437
          %v485 = vunpack.c.l.b16 %v438
          %v486 = vunpack.c.h.b16 %v438
          %v487 = vpack.c.b16 %v473, %v471
          %v488 = vpack.c.b16 %v474, %v472
          %v489 = vpack.c.b16 %v477, %v475
          %v490 = vpack.c.b16 %v478, %v476
          %v491 = vpack.c.b16 %v481, %v479
          %v492 = vpack.c.b16 %v482, %v480
          %v493 = vpack.c.b16 %v485, %v483
          %v494 = vpack.c.b16 %v486, %v484
          %vm499 = vcmask 523264
          %v501 = vsel %vm499, %v488, 0
          %v504 = vsel %vm499, %v490, 0
          %v507 = vsel %vm499, %v492, 0
          %v510 = vsel %vm499, %v494, 0
          %512 = vmatprep.subr.bf16.mxu0 %v440
          %513 = vmatpush1.bf16.msra.mxu0 %v439
          %514 = vmatprep.subr.bf16.mxu0 %v442
          %515 = vmatpush1.bf16.msra.mxu0 %v441
          %516 = vmatprep.subr.bf16.mxu0 %v444
          %517 = vmatpush1.bf16.msra.mxu0 %v443
          %518 = vmatprep.subr.bf16.mxu0 %v446
          %519 = vmatpush1.bf16.msra.mxu0 %v445
          %520 = vmatprep.subr.bf16.mxu0 %v391
          %521 = vmatpush1.bf16.msra.mxu0 %v390
          %522 = vmatprep.subr.bf16.mxu0 %v393
          %523 = vmatpush1.bf16.msra.mxu0 %v392
          %524 = vmatprep.subr.bf16.mxu0 %v395
          %525 = vmatpush1.bf16.msra.mxu0 %v394
          %526 = vmatprep.subr.bf16.mxu0 %v397
          %527 = vmatpush1.bf16.msra.mxu0 %v396
          %528 = vmatprep.subr.bf16.mxu0 %v424
          %529 = vmatpush1.bf16.msra.mxu0 %v423
          %530 = vmatprep.subr.bf16.mxu0 %v426
          %531 = vmatpush1.bf16.msra.mxu0 %v425
          %532 = vmatprep.subr.bf16.mxu0 %v428
          %533 = vmatpush1.bf16.msra.mxu0 %v427
          %534 = vmatprep.subr.bf16.mxu0 %v430
          %535 = vmatpush1.bf16.msra.mxu0 %v429
          %536 = vmatprep.subr.bf16.mxu0 0
          %537 = vmatpush1.bf16.msra.mxu0 0
          %538 = vmatprep.subr.bf16.mxu0 0
          %539 = vmatpush1.bf16.msra.mxu0 0
          %540 = vmatprep.subr.bf16.mxu0 0
          %541 = vmatpush1.bf16.msra.mxu0 0
          %542 = vmatprep.subr.bf16.mxu0 0
          %543 = vmatpush1.bf16.msra.mxu0 0
          %544 = vmatprep.mubr.bf16.mxu0 %v501
          %545 = vmatmul.mubr.bf16.gmra.mrb[0].mxu0 %v487
          %v546 = vpop.f32.mrb[0].mxu0
          %v547 = vadd.f32 0.0, %v546
          %v548 = vpop.f32.mrb[0].mxu0
          %v549 = vadd.f32 0.0, %v548
          %v550 = vpop.f32.mrb[0].mxu0
          %v551 = vadd.f32 0.0, %v550
          %v552 = vpop.f32.mrb[0].mxu0
          %v553 = vadd.f32 0.0, %v552
          %554 = vmatprep.mubr.bf16.mxu0 %v504
          %555 = vmatmul.mubr.bf16.gmra.mrb[0].mxu0 %v489
          %v556 = vpop.f32.mrb[0].mxu0
          %v557 = vadd.f32 0.0, %v556
          %v558 = vpop.f32.mrb[0].mxu0
          %v559 = vadd.f32 0.0, %v558
          %v560 = vpop.f32.mrb[0].mxu0
          %v561 = vadd.f32 0.0, %v560
          %v562 = vpop.f32.mrb[0].mxu0
          %v563 = vadd.f32 0.0, %v562
          %564 = vmatprep.mubr.bf16.mxu0 %v507
          %565 = vmatmul.mubr.bf16.gmra.mrb[0].mxu0 %v491
          %v566 = vpop.f32.mrb[0].mxu0
          %v567 = vadd.f32 0.0, %v566
          %v568 = vpop.f32.mrb[0].mxu0
          %v569 = vadd.f32 0.0, %v568
          %v570 = vpop.f32.mrb[0].mxu0
          %v571 = vadd.f32 0.0, %v570
          %v572 = vpop.f32.mrb[0].mxu0
          %v573 = vadd.f32 0.0, %v572
          %574 = vmatprep.mubr.bf16.mxu0 %v510
          %575 = vmatmul.mubr.bf16.gmra.mrb[0].mxu0 %v493
          %v576 = vpop.f32.mrb[0].mxu0
          %v577 = vadd.f32 0.0, %v576
          %v578 = vpop.f32.mrb[0].mxu0
          %v579 = vadd.f32 0.0, %v578
          %v580 = vpop.f32.mrb[0].mxu0
          %v581 = vadd.f32 0.0, %v580
          %v582 = vpop.f32.mrb[0].mxu0
          %v583 = vadd.f32 0.0, %v582
          %584 = vdwg.mxu0
          %v586 = vlaneseq
          %v587 = vshrl.u32 %v586, 7
          %v588 = vsub.s32 0, %v587
          %v589 = vrot.slane %v252, %v588
          %v590 = vlaneseq
          %v591 = vshrl.u32 %v590, 7
          %v592 = vsub.s32 1, %v591
          %v593 = vrot.slane %v252, %v592
          %v596 = vmul.f32 %v589, %v547
          %v597 = vmul.f32 %v593, %v549
          %v598 = vmul.f32 %v589, %v551
          %v599 = vmul.f32 %v593, %v553
          %v600 = vmul.f32 %v589, %v557
          %v601 = vmul.f32 %v593, %v559
          %v602 = vmul.f32 %v589, %v561
          %v603 = vmul.f32 %v593, %v563
          %v604 = vmul.f32 %v589, %v567
          %v605 = vmul.f32 %v593, %v569
          %v606 = vmul.f32 %v589, %v571
          %v607 = vmul.f32 %v593, %v573
          %v608 = vmul.f32 %v589, %v577
          %v609 = vmul.f32 %v593, %v579
          %v610 = vmul.f32 %v589, %v581
          %v611 = vmul.f32 %v593, %v583
          %v620 = vunpack.c.l.b16 %v333
          %v621 = vunpack.c.h.b16 %v333
          %v622 = vunpack.c.l.b16 %v334
          %v623 = vunpack.c.h.b16 %v334
          %v624 = vunpack.c.l.b16 %v335
          %v625 = vunpack.c.h.b16 %v335
          %v626 = vunpack.c.l.b16 %v336
          %v627 = vunpack.c.h.b16 %v336
          %v628 = vunpack.c.l.b16 %v337
          %v629 = vunpack.c.h.b16 %v337
          %v630 = vunpack.c.l.b16 %v338
          %v631 = vunpack.c.h.b16 %v338
          %v632 = vunpack.c.l.b16 %v339
          %v633 = vunpack.c.h.b16 %v339
          %v634 = vunpack.c.l.b16 %v340
          %v635 = vunpack.c.h.b16 %v340
          %v636 = vpack.c.b16 %v622, %v620
          %v637 = vpack.c.b16 %v623, %v621
          %v638 = vpack.c.b16 %v626, %v624
          %v639 = vpack.c.b16 %v627, %v625
          %v640 = vpack.c.b16 %v630, %v628
          %v641 = vpack.c.b16 %v631, %v629
          %v642 = vpack.c.b16 %v634, %v632
          %v643 = vpack.c.b16 %v635, %v633
          %648 = vrot.lane.b32.xlu0 %v341, 127
          %v649 = vpop.permute.xlu0 %648
          %650 = vrot.lane.b32.xlu0 %v342, 127
          %v651 = vpop.permute.xlu0 %650
          %652 = vrot.lane.b32.xlu0 %v343, 127
          %v653 = vpop.permute.xlu0 %652
          %654 = vrot.lane.b32.xlu0 %v344, 127
          %v655 = vpop.permute.xlu0 %654
          %656 = vrot.lane.b32.xlu0 %v345, 127
          %v657 = vpop.permute.xlu0 %656
          %658 = vrot.lane.b32.xlu0 %v346, 127
          %v659 = vpop.permute.xlu0 %658
          %660 = vrot.lane.b32.xlu0 %v347, 127
          %v661 = vpop.permute.xlu0 %660
          %662 = vrot.lane.b32.xlu0 %v348, 127
          %v663 = vpop.permute.xlu0 %662
          %664 = vrot.lane.b32.xlu0 %v349, 127
          %v665 = vpop.permute.xlu0 %664
          %666 = vrot.lane.b32.xlu0 %v350, 127
          %v667 = vpop.permute.xlu0 %666
          %668 = vrot.lane.b32.xlu0 %v351, 127
          %v669 = vpop.permute.xlu0 %668
          %670 = vrot.lane.b32.xlu0 %v352, 127
          %v671 = vpop.permute.xlu0 %670
          %672 = vrot.lane.b32.xlu0 %v390, 127
          %v673 = vpop.permute.xlu0 %672
          %674 = vrot.lane.b32.xlu0 %v391, 127
          %v675 = vpop.permute.xlu0 %674
          %676 = vrot.lane.b32.xlu0 %v370, 127
          %v677 = vpop.permute.xlu0 %676
          %678 = vrot.lane.b32.xlu0 %v392, 127
          %v679 = vpop.permute.xlu0 %678
          %680 = vrot.lane.b32.xlu0 %v393, 127
          %v681 = vpop.permute.xlu0 %680
          %682 = vrot.lane.b32.xlu0 %v376, 127
          %v683 = vpop.permute.xlu0 %682
          %684 = vrot.lane.b32.xlu0 %v394, 127
          %v685 = vpop.permute.xlu0 %684
          %686 = vrot.lane.b32.xlu0 %v395, 127
          %v687 = vpop.permute.xlu0 %686
          %688 = vrot.lane.b32.xlu0 %v382, 127
          %v689 = vpop.permute.xlu0 %688
          %690 = vrot.lane.b32.xlu0 %v396, 127
          %v691 = vpop.permute.xlu0 %690
          %692 = vrot.lane.b32.xlu0 %v397, 127
          %v693 = vpop.permute.xlu0 %692
          %694 = vrot.lane.b32.xlu0 %v388, 127
          %v695 = vpop.permute.xlu0 %694
          %696 = vrot.lane.b32.xlu0 %v423, 127
          %v697 = vpop.permute.xlu0 %696
          %698 = vrot.lane.b32.xlu0 %v424, 127
          %v699 = vpop.permute.xlu0 %698
          %700 = vrot.lane.b32.xlu0 %v403, 127
          %v701 = vpop.permute.xlu0 %700
          %702 = vrot.lane.b32.xlu0 %v425, 127
          %v703 = vpop.permute.xlu0 %702
          %704 = vrot.lane.b32.xlu0 %v426, 127
          %v705 = vpop.permute.xlu0 %704
          %706 = vrot.lane.b32.xlu0 %v409, 127
          %v707 = vpop.permute.xlu0 %706
          %708 = vrot.lane.b32.xlu0 %v427, 127
          %v709 = vpop.permute.xlu0 %708
          %710 = vrot.lane.b32.xlu0 %v428, 127
          %v711 = vpop.permute.xlu0 %710
          %712 = vrot.lane.b32.xlu0 %v415, 127
          %v713 = vpop.permute.xlu0 %712
          %714 = vrot.lane.b32.xlu0 %v429, 127
          %v715 = vpop.permute.xlu0 %714
          %716 = vrot.lane.b32.xlu0 %v430, 127
          %v717 = vpop.permute.xlu0 %716
          %718 = vrot.lane.b32.xlu0 %v421, 127
          %v719 = vpop.permute.xlu0 %718
          %vm720 = vcmask 1039360
          %v721 = vsel %vm720, %v649, %v651
          %v722 = vsel %vm720, %v651, %v653
          %v723 = vsel %vm720, %v655, %v657
          %v724 = vsel %vm720, %v657, %v659
          %v725 = vsel %vm720, %v661, %v663
          %v726 = vsel %vm720, %v663, %v665
          %v727 = vsel %vm720, %v667, %v669
          %v728 = vsel %vm720, %v669, %v671
          %v729 = vsel %vm720, %v673, %v675
          %v730 = vsel %vm720, %v675, %v677
          %v731 = vsel %vm720, %v679, %v681
          %v732 = vsel %vm720, %v681, %v683
          %v733 = vsel %vm720, %v685, %v687
          %v734 = vsel %vm720, %v687, %v689
          %v735 = vsel %vm720, %v691, %v693
          %v736 = vsel %vm720, %v693, %v695
          %v737 = vsel %vm720, %v697, %v699
          %v738 = vsel %vm720, %v699, %v701
          %v739 = vsel %vm720, %v703, %v705
          %v740 = vsel %vm720, %v705, %v707
          %v741 = vsel %vm720, %v709, %v711
          %v742 = vsel %vm720, %v711, %v713
          %v743 = vsel %vm720, %v715, %v717
          %v744 = vsel %vm720, %v717, %v719
          %v770 = vsel %vm499, %v637, 0
          %v773 = vsel %vm499, %v639, 0
          %v776 = vsel %vm499, %v641, 0
          %v779 = vsel %vm499, %v643, 0
          %781 = vmatprep.subr.bf16.mxu0 %v722
          %782 = vmatpush1.bf16.msra.mxu0 %v721
          %783 = vmatprep.subr.bf16.mxu0 %v724
          %784 = vmatpush1.bf16.msra.mxu0 %v723
          %785 = vmatprep.subr.bf16.mxu0 %v726
          %786 = vmatpush1.bf16.msra.mxu0 %v725
          %787 = vmatprep.subr.bf16.mxu0 %v728
          %788 = vmatpush1.bf16.msra.mxu0 %v727
          %789 = vmatprep.subr.bf16.mxu0 %v730
          %790 = vmatpush1.bf16.msra.mxu0 %v729
          %791 = vmatprep.subr.bf16.mxu0 %v732
          %792 = vmatpush1.bf16.msra.mxu0 %v731
          %793 = vmatprep.subr.bf16.mxu0 %v734
          %794 = vmatpush1.bf16.msra.mxu0 %v733
          %795 = vmatprep.subr.bf16.mxu0 %v736
          %796 = vmatpush1.bf16.msra.mxu0 %v735
          %797 = vmatprep.subr.bf16.mxu0 %v738
          %798 = vmatpush1.bf16.msra.mxu0 %v737
          %799 = vmatprep.subr.bf16.mxu0 %v740
          %800 = vmatpush1.bf16.msra.mxu0 %v739
          %801 = vmatprep.subr.bf16.mxu0 %v742
          %802 = vmatpush1.bf16.msra.mxu0 %v741
          %803 = vmatprep.subr.bf16.mxu0 %v744
          %804 = vmatpush1.bf16.msra.mxu0 %v743
          %805 = vmatprep.subr.bf16.mxu0 0
          %806 = vmatpush1.bf16.msra.mxu0 0
          %807 = vmatprep.subr.bf16.mxu0 0
          %808 = vmatpush1.bf16.msra.mxu0 0
          %809 = vmatprep.subr.bf16.mxu0 0
          %810 = vmatpush1.bf16.msra.mxu0 0
          %811 = vmatprep.subr.bf16.mxu0 0
          %812 = vmatpush1.bf16.msra.mxu0 0
          %813 = vmatprep.mubr.bf16.mxu0 %v770
          %814 = vmatmul.mubr.bf16.gmra.mrb[0].mxu0 %v636
          %v815 = vpop.f32.mrb[0].mxu0
          %v816 = vadd.f32 %v596, %v815
          %v817 = vpop.f32.mrb[0].mxu0
          %v818 = vadd.f32 %v597, %v817
          %v819 = vpop.f32.mrb[0].mxu0
          %v820 = vadd.f32 %v598, %v819
          %v821 = vpop.f32.mrb[0].mxu0
          %v822 = vadd.f32 %v599, %v821
          %823 = vmatprep.mubr.bf16.mxu0 %v773
          %824 = vmatmul.mubr.bf16.gmra.mrb[0].mxu0 %v638
          %v825 = vpop.f32.mrb[0].mxu0
          %v826 = vadd.f32 %v600, %v825
          %v827 = vpop.f32.mrb[0].mxu0
          %v828 = vadd.f32 %v601, %v827
          %v829 = vpop.f32.mrb[0].mxu0
          %v830 = vadd.f32 %v602, %v829
          %v831 = vpop.f32.mrb[0].mxu0
          %v832 = vadd.f32 %v603, %v831
          %833 = vmatprep.mubr.bf16.mxu0 %v776
          %834 = vmatmul.mubr.bf16.gmra.mrb[0].mxu0 %v640
          %v835 = vpop.f32.mrb[0].mxu0
          %v836 = vadd.f32 %v604, %v835
          %v837 = vpop.f32.mrb[0].mxu0
          %v838 = vadd.f32 %v605, %v837
          %v839 = vpop.f32.mrb[0].mxu0
          %v840 = vadd.f32 %v606, %v839
          %v841 = vpop.f32.mrb[0].mxu0
          %v842 = vadd.f32 %v607, %v841
          %843 = vmatprep.mubr.bf16.mxu0 %v779
          %844 = vmatmul.mubr.bf16.gmra.mrb[0].mxu0 %v642
          %v845 = vpop.f32.mrb[0].mxu0
          %v846 = vadd.f32 %v608, %v845
          %v847 = vpop.f32.mrb[0].mxu0
          %v848 = vadd.f32 %v609, %v847
          %v849 = vpop.f32.mrb[0].mxu0
          %v850 = vadd.f32 %v610, %v849
          %v851 = vpop.f32.mrb[0].mxu0
          %v852 = vadd.f32 %v611, %v851
          %853 = vdwg.mxu0
          %s854 = scalar_lea.vmem %s219, 128 [#allocation7]
          %v855 = vld [vmem:[%s854] sm:$0xff]
          %v856 = vld [vmem:[%s854 + $0x8] sm:$0xff]
          %v857 = vld [vmem:[%s854 + $0x10] sm:$0xff]
          %v858 = vld [vmem:[%s854 + $0x18] sm:$0xff]
          %v859 = vld [vmem:[%s854 + $0x20] sm:$0xff]
          %v860 = vld [vmem:[%s854 + $0x28] sm:$0xff]
          %v861 = vld [vmem:[%s854 + $0x30] sm:$0xff]
          %v862 = vld [vmem:[%s854 + $0x38] sm:$0xff]
          %v871 = vunpack.c.l.b16 %v855
          %v872 = vunpack.c.h.b16 %v855
          %v873 = vunpack.c.l.b16 %v856
          %v874 = vunpack.c.h.b16 %v856
          %v875 = vunpack.c.l.b16 %v857
          %v876 = vunpack.c.h.b16 %v857
          %v877 = vunpack.c.l.b16 %v858
          %v878 = vunpack.c.h.b16 %v858
          %v879 = vunpack.c.l.b16 %v859
          %v880 = vunpack.c.h.b16 %v859
          %v881 = vunpack.c.l.b16 %v860
          %v882 = vunpack.c.h.b16 %v860
          %v883 = vunpack.c.l.b16 %v861
          %v884 = vunpack.c.h.b16 %v861
          %v885 = vunpack.c.l.b16 %v862
          %v886 = vunpack.c.h.b16 %v862
          %v887 = vpack.c.b16 %v873, %v871
          %v888 = vpack.c.b16 %v874, %v872
          %v889 = vpack.c.b16 %v877, %v875
          %v890 = vpack.c.b16 %v878, %v876
          %v891 = vpack.c.b16 %v881, %v879
          %v892 = vpack.c.b16 %v882, %v880
          %v893 = vpack.c.b16 %v885, %v883
          %v894 = vpack.c.b16 %v886, %v884
          %899 = vrot.lane.b32.xlu0 %v341, 126
          %v900 = vpop.permute.xlu0 %899
          %901 = vrot.lane.b32.xlu0 %v342, 126
          %v902 = vpop.permute.xlu0 %901
          %903 = vrot.lane.b32.xlu0 %v343, 126
          %v904 = vpop.permute.xlu0 %903
          %905 = vrot.lane.b32.xlu0 %v344, 126
          %v906 = vpop.permute.xlu0 %905
          %907 = vrot.lane.b32.xlu0 %v345, 126
          %v908 = vpop.permute.xlu0 %907
          %909 = vrot.lane.b32.xlu0 %v346, 126
          %v910 = vpop.permute.xlu0 %909
          %911 = vrot.lane.b32.xlu0 %v347, 126
          %v912 = vpop.permute.xlu0 %911
          %913 = vrot.lane.b32.xlu0 %v348, 126
          %v914 = vpop.permute.xlu0 %913
          %915 = vrot.lane.b32.xlu0 %v349, 126
          %v916 = vpop.permute.xlu0 %915
          %917 = vrot.lane.b32.xlu0 %v350, 126
          %v918 = vpop.permute.xlu0 %917
          %919 = vrot.lane.b32.xlu0 %v351, 126
          %v920 = vpop.permute.xlu0 %919
          %921 = vrot.lane.b32.xlu0 %v352, 126
          %v922 = vpop.permute.xlu0 %921
          %923 = vrot.lane.b32.xlu0 %v390, 126
          %v924 = vpop.permute.xlu0 %923
          %925 = vrot.lane.b32.xlu0 %v391, 126
          %v926 = vpop.permute.xlu0 %925
          %927 = vrot.lane.b32.xlu0 %v370, 126
          %v928 = vpop.permute.xlu0 %927
          %929 = vrot.lane.b32.xlu0 %v392, 126
          %v930 = vpop.permute.xlu0 %929
          %931 = vrot.lane.b32.xlu0 %v393, 126
          %v932 = vpop.permute.xlu0 %931
          %933 = vrot.lane.b32.xlu0 %v376, 126
          %v934 = vpop.permute.xlu0 %933
          %935 = vrot.lane.b32.xlu0 %v394, 126
          %v936 = vpop.permute.xlu0 %935
          %937 = vrot.lane.b32.xlu0 %v395, 126
          %v938 = vpop.permute.xlu0 %937
          %939 = vrot.lane.b32.xlu0 %v382, 126
          %v940 = vpop.permute.xlu0 %939
          %941 = vrot.lane.b32.xlu0 %v396, 126
          %v942 = vpop.permute.xlu0 %941
          %943 = vrot.lane.b32.xlu0 %v397, 126
          %v944 = vpop.permute.xlu0 %943
          %945 = vrot.lane.b32.xlu0 %v388, 126
          %v946 = vpop.permute.xlu0 %945
          %947 = vrot.lane.b32.xlu0 %v423, 126
          %v948 = vpop.permute.xlu0 %947
          %949 = vrot.lane.b32.xlu0 %v424, 126
          %v950 = vpop.permute.xlu0 %949
          %951 = vrot.lane.b32.xlu0 %v403, 126
          %v952 = vpop.permute.xlu0 %951
          %953 = vrot.lane.b32.xlu0 %v425, 126
          %v954 = vpop.permute.xlu0 %953
          %955 = vrot.lane.b32.xlu0 %v426, 126
          %v956 = vpop.permute.xlu0 %955
          %957 = vrot.lane.b32.xlu0 %v409, 126
          %v958 = vpop.permute.xlu0 %957
          %959 = vrot.lane.b32.xlu0 %v427, 126
          %v960 = vpop.permute.xlu0 %959
          %961 = vrot.lane.b32.xlu0 %v428, 126
          %v962 = vpop.permute.xlu0 %961
          %963 = vrot.lane.b32.xlu0 %v415, 126
          %v964 = vpop.permute.xlu0 %963
          %965 = vrot.lane.b32.xlu0 %v429, 126
          %v966 = vpop.permute.xlu0 %965
          %967 = vrot.lane.b32.xlu0 %v430, 126
          %v968 = vpop.permute.xlu0 %967
          %969 = vrot.lane.b32.xlu0 %v421, 126
          %v970 = vpop.permute.xlu0 %969
          %vm971 = vcmask 1031168
          %v972 = vsel %vm971, %v900, %v902
          %v973 = vsel %vm971, %v902, %v904
          %v974 = vsel %vm971, %v906, %v908
          %v975 = vsel %vm971, %v908, %v910
          %v976 = vsel %vm971, %v912, %v914
          %v977 = vsel %vm971, %v914, %v916
          %v978 = vsel %vm971, %v918, %v920
          %v979 = vsel %vm971, %v920, %v922
          %v980 = vsel %vm971, %v924, %v926
          %v981 = vsel %vm971, %v926, %v928
          %v982 = vsel %vm971, %v930, %v932
          %v983 = vsel %vm971, %v932, %v934
          %v984 = vsel %vm971, %v936, %v938
          %v985 = vsel %vm971, %v938, %v940
          %v986 = vsel %vm971, %v942, %v944
          %v987 = vsel %vm971, %v944, %v946
          %v988 = vsel %vm971, %v948, %v950
          %v989 = vsel %vm971, %v950, %v952
          %v990 = vsel %vm971, %v954, %v956
          %v991 = vsel %vm971, %v956, %v958
          %v992 = vsel %vm971, %v960, %v962
          %v993 = vsel %vm971, %v962, %v964
          %v994 = vsel %vm971, %v966, %v968
          %v995 = vsel %vm971, %v968, %v970
          %v1021 = vsel %vm499, %v888, 0
          %v1024 = vsel %vm499, %v890, 0
          %v1027 = vsel %vm499, %v892, 0
          %v1030 = vsel %vm499, %v894, 0
          %1032 = vmatprep.subr.bf16.mxu0 %v973
          %1033 = vmatpush1.bf16.msra.mxu0 %v972
          %1034 = vmatprep.subr.bf16.mxu0 %v975
          %1035 = vmatpush1.bf16.msra.mxu0 %v974
          %1036 = vmatprep.subr.bf16.mxu0 %v977
          %1037 = vmatpush1.bf16.msra.mxu0 %v976
          %1038 = vmatprep.subr.bf16.mxu0 %v979
          %1039 = vmatpush1.bf16.msra.mxu0 %v978
          %1040 = vmatprep.subr.bf16.mxu0 %v981
          %1041 = vmatpush1.bf16.msra.mxu0 %v980
          %1042 = vmatprep.subr.bf16.mxu0 %v983
          %1043 = vmatpush1.bf16.msra.mxu0 %v982
          %1044 = vmatprep.subr.bf16.mxu0 %v985
          %1045 = vmatpush1.bf16.msra.mxu0 %v984
          %1046 = vmatprep.subr.bf16.mxu0 %v987
          %1047 = vmatpush1.bf16.msra.mxu0 %v986
          %1048 = vmatprep.subr.bf16.mxu0 %v989
          %1049 = vmatpush1.bf16.msra.mxu0 %v988
          %1050 = vmatprep.subr.bf16.mxu0 %v991
          %1051 = vmatpush1.bf16.msra.mxu0 %v990
          %1052 = vmatprep.subr.bf16.mxu0 %v993
          %1053 = vmatpush1.bf16.msra.mxu0 %v992
          %1054 = vmatprep.subr.bf16.mxu0 %v995
          %1055 = vmatpush1.bf16.msra.mxu0 %v994
          %1056 = vmatprep.subr.bf16.mxu0 0
          %1057 = vmatpush1.bf16.msra.mxu0 0
          %1058 = vmatprep.subr.bf16.mxu0 0
          %1059 = vmatpush1.bf16.msra.mxu0 0
          %1060 = vmatprep.subr.bf16.mxu0 0
          %1061 = vmatpush1.bf16.msra.mxu0 0
          %1062 = vmatprep.subr.bf16.mxu0 0
          %1063 = vmatpush1.bf16.msra.mxu0 0
          %1064 = vmatprep.mubr.bf16.mxu0 %v1021
          %1065 = vmatmul.mubr.bf16.gmra.mrb[0].mxu0 %v887
          %v1066 = vpop.f32.mrb[0].mxu0
          %v1067 = vadd.f32 0.0, %v1066
          %v1068 = vpop.f32.mrb[0].mxu0
          %v1069 = vadd.f32 0.0, %v1068
          %v1070 = vpop.f32.mrb[0].mxu0
          %v1071 = vadd.f32 0.0, %v1070
          %v1072 = vpop.f32.mrb[0].mxu0
          %v1073 = vadd.f32 0.0, %v1072
          %1074 = vmatprep.mubr.bf16.mxu0 %v1024
          %1075 = vmatmul.mubr.bf16.gmra.mrb[0].mxu0 %v889
          %v1076 = vpop.f32.mrb[0].mxu0
          %v1077 = vadd.f32 0.0, %v1076
          %v1078 = vpop.f32.mrb[0].mxu0
          %v1079 = vadd.f32 0.0, %v1078
          %v1080 = vpop.f32.mrb[0].mxu0
          %v1081 = vadd.f32 0.0, %v1080
          %v1082 = vpop.f32.mrb[0].mxu0
          %v1083 = vadd.f32 0.0, %v1082
          %1084 = vmatprep.mubr.bf16.mxu0 %v1027
          %1085 = vmatmul.mubr.bf16.gmra.mrb[0].mxu0 %v891
          %v1086 = vpop.f32.mrb[0].mxu0
          %v1087 = vadd.f32 0.0, %v1086
          %v1088 = vpop.f32.mrb[0].mxu0
          %v1089 = vadd.f32 0.0, %v1088
          %v1090 = vpop.f32.mrb[0].mxu0
          %v1091 = vadd.f32 0.0, %v1090
          %v1092 = vpop.f32.mrb[0].mxu0
          %v1093 = vadd.f32 0.0, %v1092
          %1094 = vmatprep.mubr.bf16.mxu0 %v1030
          %1095 = vmatmul.mubr.bf16.gmra.mrb[0].mxu0 %v893
          %v1096 = vpop.f32.mrb[0].mxu0
          %v1097 = vadd.f32 0.0, %v1096
          %v1098 = vpop.f32.mrb[0].mxu0
          %v1099 = vadd.f32 0.0, %v1098
          %v1100 = vpop.f32.mrb[0].mxu0
          %v1101 = vadd.f32 0.0, %v1100
          %v1102 = vpop.f32.mrb[0].mxu0
          %v1103 = vadd.f32 0.0, %v1102
          %1104 = vdwg.mxu0
          %v1106 = vlaneseq
          %v1107 = vshrl.u32 %v1106, 7
          %v1108 = vsub.s32 0, %v1107
          %v1109 = vrot.slane %v254, %v1108
          %v1110 = vlaneseq
          %v1111 = vshrl.u32 %v1110, 7
          %v1112 = vsub.s32 1, %v1111
          %v1113 = vrot.slane %v254, %v1112
          %v1116 = vmul.f32 %v1109, %v1067
          %v1117 = vmul.f32 %v1113, %v1069
          %v1118 = vmul.f32 %v1109, %v1071
          %v1119 = vmul.f32 %v1113, %v1073
          %v1120 = vmul.f32 %v1109, %v1077
          %v1121 = vmul.f32 %v1113, %v1079
          %v1122 = vmul.f32 %v1109, %v1081
          %v1123 = vmul.f32 %v1113, %v1083
          %v1124 = vmul.f32 %v1109, %v1087
          %v1125 = vmul.f32 %v1113, %v1089
          %v1126 = vmul.f32 %v1109, %v1091
          %v1127 = vmul.f32 %v1113, %v1093
          %v1128 = vmul.f32 %v1109, %v1097
          %v1129 = vmul.f32 %v1113, %v1099
          %v1130 = vmul.f32 %v1109, %v1101
          %v1131 = vmul.f32 %v1113, %v1103
          %v1132 = vadd.f32 %v816, %v1116
          %v1133 = vadd.f32 %v818, %v1117
          %v1134 = vadd.f32 %v820, %v1118
          %v1135 = vadd.f32 %v822, %v1119
          %v1136 = vadd.f32 %v826, %v1120
          %v1137 = vadd.f32 %v828, %v1121
          %v1138 = vadd.f32 %v830, %v1122
          %v1139 = vadd.f32 %v832, %v1123
          %v1140 = vadd.f32 %v836, %v1124
          %v1141 = vadd.f32 %v838, %v1125
          %v1142 = vadd.f32 %v840, %v1126
          %v1143 = vadd.f32 %v842, %v1127
          %v1144 = vadd.f32 %v846, %v1128
          %v1145 = vadd.f32 %v848, %v1129
          %v1146 = vadd.f32 %v850, %v1130
          %v1147 = vadd.f32 %v852, %v1131
          %p1148 = scmp.lt.s32.totalorder %s28, 19
          // Predicated region
          $region53: #{vdsr_forward.1} parent=51 // pred_check
            %p1149 = pneg %p1148
          $region54: #{vdsr_forward.1} parent=51 // pred_check_branch
            %1151 = sbr.rel (%p1149) target = $region56
          $region55: #{vdsr_forward.1} parent=51 // pred_region
            %v1152 = vmax.f32 %v1132, 0.0
            %v1153 = vmax.f32 %v1133, 0.0
            %v1154 = vmax.f32 %v1134, 0.0
            %v1155 = vmax.f32 %v1135, 0.0
            %v1156 = vmax.f32 %v1136, 0.0
            %v1157 = vmax.f32 %v1137, 0.0
            %v1158 = vmax.f32 %v1138, 0.0
            %v1159 = vmax.f32 %v1139, 0.0
            %v1160 = vmax.f32 %v1140, 0.0
            %v1161 = vmax.f32 %v1141, 0.0
            %v1162 = vmax.f32 %v1142, 0.0
            %v1163 = vmax.f32 %v1143, 0.0
            %v1164 = vmax.f32 %v1144, 0.0
            %v1165 = vmax.f32 %v1145, 0.0
            %v1166 = vmax.f32 %v1146, 0.0
            %v1167 = vmax.f32 %v1147, 0.0
            %v1168 = vpack.c.bf16 %v1154, %v1152
            %v1169 = vpack.c.bf16 %v1155, %v1153
            %v1170 = vpack.c.bf16 %v1158, %v1156
            %v1171 = vpack.c.bf16 %v1159, %v1157
            %v1172 = vpack.c.bf16 %v1162, %v1160
            %v1173 = vpack.c.bf16 %v1163, %v1161
            %v1174 = vpack.c.bf16 %v1166, %v1164
            %v1175 = vpack.c.bf16 %v1167, %v1165
            %1184 = vrot.lane.b32.xlu0 %v1168, 17
            %v1185 = vpop.permute.xlu0 %1184
            %1186 = vrot.lane.b32.xlu0 %v1169, 17
            %v1187 = vpop.permute.xlu0 %1186
            %1188 = vrot.lane.b32.xlu0 %v1170, 17
            %v1189 = vpop.permute.xlu0 %1188
            %1190 = vrot.lane.b32.xlu0 %v1171, 17
            %v1191 = vpop.permute.xlu0 %1190
            %1192 = vrot.lane.b32.xlu0 %v1172, 17
            %v1193 = vpop.permute.xlu0 %1192
            %1194 = vrot.lane.b32.xlu0 %v1173, 17
            %v1195 = vpop.permute.xlu0 %1194
            %1196 = vrot.lane.b32.xlu0 %v1174, 17
            %v1197 = vpop.permute.xlu0 %1196
            %1198 = vrot.lane.b32.xlu0 %v1175, 17
            %v1199 = vpop.permute.xlu0 %1198
            %vm1200 = vcmask 138240
            %v1201 = vsel %vm1200, %v1185, %v1187
            %v1202 = vsel %vm1200, %v1189, %v1191
            %v1203 = vsel %vm1200, %v1193, %v1195
            %v1204 = vsel %vm1200, %v1197, %v1199
            %vm1217 = vcmask 1047688
            %1218 = vst.msk [vmem:[#allocation3] sm:$0xff] %vm1217, %v1185
            %1219 = vst [vmem:[#allocation3 + $0x8] sm:$0xff] %v1201
            %vm1220 = vcmask 138240
            %1221 = vst.msk [vmem:[#allocation3 + $0x10] sm:$0xff] %vm1220, %v1187
            %1222 = vst.msk [vmem:[#allocation3 + $0x18] sm:$0xff] %vm1217, %v1189
            %1223 = vst [vmem:[#allocation3 + $0x20] sm:$0xff] %v1202
            %1224 = vst.msk [vmem:[#allocation3 + $0x28] sm:$0xff] %vm1220, %v1191
            %1225 = vst.msk [vmem:[#allocation3 + $0x30] sm:$0xff] %vm1217, %v1193
            %1226 = vst [vmem:[#allocation3 + $0x38] sm:$0xff] %v1203
            %1227 = vst.msk [vmem:[#allocation3 + $0x40] sm:$0xff] %vm1220, %v1195
            %1228 = vst.msk [vmem:[#allocation3 + $0x48] sm:$0xff] %vm1217, %v1197
            %1229 = vst [vmem:[#allocation3 + $0x50] sm:$0xff] %v1204
            %1230 = vst.msk [vmem:[#allocation3 + $0x58] sm:$0xff] %vm1220, %v1199
          $region56: #{vdsr_forward.1} parent=51 // pred_fallthru
            _
          %p1231 = scmp.eq.s32.totalorder %s28, 19
          // Predicated region
          $region57: #{vdsr_forward.1} parent=51 // pred_check
            %p1232 = pneg %p1231
          $region58: #{vdsr_forward.1} parent=51 // pred_check_branch
            %1234 = sbr.rel (%p1232) target = $region60
          $region59: #{vdsr_forward.1} parent=51 // pred_region
            %v1235 = vld [vmem:[%s210] sm:$0x77]
            %v1237 = vcombine.high %v1235, %v1235
            %v1239 = vadd.f32 %v1132, %v1235
            %v1240 = vadd.f32 %v1133, %v1237
            %v1243 = vcombine.low %v1239, %v1240
            %1245 = vst [vmem:[%s250] sm:$0x77] %v1243
          $region60: #{vdsr_forward.1} parent=51 // pred_fallthru
            _
        $region52: #{vdsr_forward.1} parent=31 // pred_fallthru
          _
        %p1246 = scmp.eq.s32.totalorder %s327, 1
        // Predicated region
        $region61: #{vdsr_forward.1} parent=31 // pred_check
          %p1247 = pneg %p1246
        $region62: #{vdsr_forward.1} parent=31 // pred_check_branch
          %1249 = sbr.rel (%p1247) target = $region64
        $region63: #{vdsr_forward.1} parent=31 // pred_region
          %s1250 = scalar_lea.vmem %s219, 64 [#allocation7]
          %v1251 = vld [vmem:[%s1250] sm:$0xff]
          %v1252 = vld [vmem:[%s1250 + $0x8] sm:$0xff]
          %v1253 = vld [vmem:[%s1250 + $0x10] sm:$0xff]
          %v1254 = vld [vmem:[%s1250 + $0x18] sm:$0xff]
          %v1255 = vld [vmem:[%s1250 + $0x20] sm:$0xff]
          %v1256 = vld [vmem:[%s1250 + $0x28] sm:$0xff]
          %v1257 = vld [vmem:[%s1250 + $0x30] sm:$0xff]
          %v1258 = vld [vmem:[%s1250 + $0x38] sm:$0xff]
          %v1259 = vld [vmem:[#allocation3] sm:$0xff]
          %v1260 = vld [vmem:[#allocation3 + $0x8] sm:$0xff]
          %v1261 = vld [vmem:[#allocation3 + $0x10] sm:$0xff]
          %v1262 = vld [vmem:[#allocation3 + $0x18] sm:$0xff]
          %v1263 = vld [vmem:[#allocation3 + $0x20] sm:$0xff]
          %v1264 = vld [vmem:[#allocation3 + $0x28] sm:$0xff]
          %v1265 = vld [vmem:[#allocation3 + $0x30] sm:$0xff]
          %v1266 = vld [vmem:[#allocation3 + $0x38] sm:$0xff]
          %v1267 = vld [vmem:[#allocation3 + $0x40] sm:$0xff]
          %v1268 = vld [vmem:[#allocation3 + $0x48] sm:$0xff]
          %v1269 = vld [vmem:[#allocation3 + $0x50] sm:$0xff]
          %v1270 = vld [vmem:[#allocation3 + $0x58] sm:$0xff]
          %1283 = vrot.lane.b32.xlu0 %v1259, 112
          %v1284 = vpop.permute.xlu0 %1283
          %1285 = vrot.lane.b32.xlu0 %v1260, 112
          %v1286 = vpop.permute.xlu0 %1285
          %1287 = vrot.lane.b32.xlu0 %v1261, 112
          %v1288 = vpop.permute.xlu0 %1287
          %1289 = vrot.lane.b32.xlu0 %v1262, 112
          %v1290 = vpop.permute.xlu0 %1289
          %1291 = vrot.lane.b32.xlu0 %v1263, 112
          %v1292 = vpop.permute.xlu0 %1291
          %1293 = vrot.lane.b32.xlu0 %v1264, 112
          %v1294 = vpop.permute.xlu0 %1293
          %1295 = vrot.lane.b32.xlu0 %v1265, 112
          %v1296 = vpop.permute.xlu0 %1295
          %1297 = vrot.lane.b32.xlu0 %v1266, 112
          %v1298 = vpop.permute.xlu0 %1297
          %1299 = vrot.lane.b32.xlu0 %v1267, 112
          %v1300 = vpop.permute.xlu0 %1299
          %1301 = vrot.lane.b32.xlu0 %v1268, 112
          %v1302 = vpop.permute.xlu0 %1301
          %1303 = vrot.lane.b32.xlu0 %v1269, 112
          %v1304 = vpop.permute.xlu0 %1303
          %1305 = vrot.lane.b32.xlu0 %v1270, 112
          %v1306 = vpop.permute.xlu0 %1305
          %vm1307 = vcmask 916480
          %v1308 = vsel %vm1307, %v1284, %v1286
          %v1309 = vsel %vm1307, %v1286, %v1288
          %v1310 = vsel %vm1307, %v1290, %v1292
          %v1311 = vsel %vm1307, %v1292, %v1294
          %v1312 = vsel %vm1307, %v1296, %v1298
          %v1313 = vsel %vm1307, %v1298, %v1300
          %v1314 = vsel %vm1307, %v1302, %v1304
          %v1315 = vsel %vm1307, %v1304, %v1306
          %1316 = vrot.lane.b32.xlu0 %v1259, 96
          %v1317 = vpop.permute.xlu0 %1316
          %1318 = vrot.lane.b32.xlu0 %v1260, 96
          %v1319 = vpop.permute.xlu0 %1318
          %1320 = vrot.lane.b32.xlu0 %v1261, 96
          %v1321 = vpop.permute.xlu0 %1320
          %1322 = vrot.lane.b32.xlu0 %v1262, 96
          %v1323 = vpop.permute.xlu0 %1322
          %1324 = vrot.lane.b32.xlu0 %v1263, 96
          %v1325 = vpop.permute.xlu0 %1324
          %1326 = vrot.lane.b32.xlu0 %v1264, 96
          %v1327 = vpop.permute.xlu0 %1326
          %1328 = vrot.lane.b32.xlu0 %v1265, 96
          %v1329 = vpop.permute.xlu0 %1328
          %1330 = vrot.lane.b32.xlu0 %v1266, 96
          %v1331 = vpop.permute.xlu0 %1330
          %1332 = vrot.lane.b32.xlu0 %v1267, 96
          %v1333 = vpop.permute.xlu0 %1332
          %1334 = vrot.lane.b32.xlu0 %v1268, 96
          %v1335 = vpop.permute.xlu0 %1334
          %1336 = vrot.lane.b32.xlu0 %v1269, 96
          %v1337 = vpop.permute.xlu0 %1336
          %1338 = vrot.lane.b32.xlu0 %v1270, 96
          %v1339 = vpop.permute.xlu0 %1338
          %vm1340 = vcmask 785408
          %v1341 = vsel %vm1340, %v1317, %v1319
          %v1342 = vsel %vm1340, %v1319, %v1321
          %v1343 = vsel %vm1340, %v1323, %v1325
          %v1344 = vsel %vm1340, %v1325, %v1327
          %v1345 = vsel %vm1340, %v1329, %v1331
          %v1346 = vsel %vm1340, %v1331, %v1333
          %v1347 = vsel %vm1340, %v1335, %v1337
          %v1348 = vsel %vm1340, %v1337, %v1339
          %v1349 = vld [vmem:[%s219] sm:$0xff]
          %v1350 = vld [vmem:[%s219 + $0x8] sm:$0xff]
          %v1351 = vld [vmem:[%s219 + $0x10] sm:$0xff]
          %v1352 = vld [vmem:[%s219 + $0x18] sm:$0xff]
          %v1353 = vld [vmem:[%s219 + $0x20] sm:$0xff]
          %v1354 = vld [vmem:[%s219 + $0x28] sm:$0xff]
          %v1355 = vld [vmem:[%s219 + $0x30] sm:$0xff]
          %v1356 = vld [vmem:[%s219 + $0x38] sm:$0xff]
          %v1357 = vld [vmem:[#allocation3] sm:$0xff]
          %v1358 = vld [vmem:[#allocation3 + $0x8] sm:$0xff]
          %v1359 = vld [vmem:[#allocation3 + $0x18] sm:$0xff]
          %v1360 = vld [vmem:[#allocation3 + $0x20] sm:$0xff]
          %v1361 = vld [vmem:[#allocation3 + $0x30] sm:$0xff]
          %v1362 = vld [vmem:[#allocation3 + $0x38] sm:$0xff]
          %v1363 = vld [vmem:[#allocation3 + $0x48] sm:$0xff]
          %v1364 = vld [vmem:[#allocation3 + $0x50] sm:$0xff]
          %v1389 = vunpack.c.l.b16 %v1349
          %v1390 = vunpack.c.h.b16 %v1349
          %v1391 = vunpack.c.l.b16 %v1350
          %v1392 = vunpack.c.h.b16 %v1350
          %v1393 = vunpack.c.l.b16 %v1351
          %v1394 = vunpack.c.h.b16 %v1351
          %v1395 = vunpack.c.l.b16 %v1352
          %v1396 = vunpack.c.h.b16 %v1352
          %v1397 = vunpack.c.l.b16 %v1353
          %v1398 = vunpack.c.h.b16 %v1353
          %v1399 = vunpack.c.l.b16 %v1354
          %v1400 = vunpack.c.h.b16 %v1354
          %v1401 = vunpack.c.l.b16 %v1355
          %v1402 = vunpack.c.h.b16 %v1355
          %v1403 = vunpack.c.l.b16 %v1356
          %v1404 = vunpack.c.h.b16 %v1356
          %v1405 = vpack.c.b16 %v1391, %v1389
          %v1406 = vpack.c.b16 %v1392, %v1390
          %v1407 = vpack.c.b16 %v1395, %v1393
          %v1408 = vpack.c.b16 %v1396, %v1394
          %v1409 = vpack.c.b16 %v1399, %v1397
          %v1410 = vpack.c.b16 %v1400, %v1398
          %v1411 = vpack.c.b16 %v1403, %v1401
          %v1412 = vpack.c.b16 %v1404, %v1402
          %vm1417 = vcmask 523264
          %v1419 = vsel %vm1417, %v1406, 0
          %v1422 = vsel %vm1417, %v1408, 0
          %v1425 = vsel %vm1417, %v1410, 0
          %v1428 = vsel %vm1417, %v1412, 0
          %1430 = vmatprep.subr.bf16.mxu0 %v1358
          %1431 = vmatpush1.bf16.msra.mxu0 %v1357
          %1432 = vmatprep.subr.bf16.mxu0 %v1360
          %1433 = vmatpush1.bf16.msra.mxu0 %v1359
          %1434 = vmatprep.subr.bf16.mxu0 %v1362
          %1435 = vmatpush1.bf16.msra.mxu0 %v1361
          %1436 = vmatprep.subr.bf16.mxu0 %v1364
          %1437 = vmatpush1.bf16.msra.mxu0 %v1363
          %1438 = vmatprep.subr.bf16.mxu0 %v1309
          %1439 = vmatpush1.bf16.msra.mxu0 %v1308
          %1440 = vmatprep.subr.bf16.mxu0 %v1311
          %1441 = vmatpush1.bf16.msra.mxu0 %v1310
          %1442 = vmatprep.subr.bf16.mxu0 %v1313
          %1443 = vmatpush1.bf16.msra.mxu0 %v1312
          %1444 = vmatprep.subr.bf16.mxu0 %v1315
          %1445 = vmatpush1.bf16.msra.mxu0 %v1314
          %1446 = vmatprep.subr.bf16.mxu0 %v1342
          %1447 = vmatpush1.bf16.msra.mxu0 %v1341
          %1448 = vmatprep.subr.bf16.mxu0 %v1344
          %1449 = vmatpush1.bf16.msra.mxu0 %v1343
          %1450 = vmatprep.subr.bf16.mxu0 %v1346
          %1451 = vmatpush1.bf16.msra.mxu0 %v1345
          %1452 = vmatprep.subr.bf16.mxu0 %v1348
          %1453 = vmatpush1.bf16.msra.mxu0 %v1347
          %1454 = vmatprep.subr.bf16.mxu0 0
          %1455 = vmatpush1.bf16.msra.mxu0 0
          %1456 = vmatprep.subr.bf16.mxu0 0
          %1457 = vmatpush1.bf16.msra.mxu0 0
          %1458 = vmatprep.subr.bf16.mxu0 0
          %1459 = vmatpush1.bf16.msra.mxu0 0
          %1460 = vmatprep.subr.bf16.mxu0 0
          %1461 = vmatpush1.bf16.msra.mxu0 0
          %1462 = vmatprep.mubr.bf16.mxu0 %v1419
          %1463 = vmatmul.mubr.bf16.gmra.mrb[0].mxu0 %v1405
          %v1464 = vpop.f32.mrb[0].mxu0
          %v1465 = vadd.f32 0.0, %v1464
          %v1466 = vpop.f32.mrb[0].mxu0
          %v1467 = vadd.f32 0.0, %v1466
          %v1468 = vpop.f32.mrb[0].mxu0
          %v1469 = vadd.f32 0.0, %v1468
          %v1470 = vpop.f32.mrb[0].mxu0
          %v1471 = vadd.f32 0.0, %v1470
          %1472 = vmatprep.mubr.bf16.mxu0 %v1422
          %1473 = vmatmul.mubr.bf16.gmra.mrb[0].mxu0 %v1407
          %v1474 = vpop.f32.mrb[0].mxu0
          %v1475 = vadd.f32 0.0, %v1474
          %v1476 = vpop.f32.mrb[0].mxu0
          %v1477 = vadd.f32 0.0, %v1476
          %v1478 = vpop.f32.mrb[0].mxu0
          %v1479 = vadd.f32 0.0, %v1478
          %v1480 = vpop.f32.mrb[0].mxu0
          %v1481 = vadd.f32 0.0, %v1480
          %1482 = vmatprep.mubr.bf16.mxu0 %v1425
          %1483 = vmatmul.mubr.bf16.gmra.mrb[0].mxu0 %v1409
          %v1484 = vpop.f32.mrb[0].mxu0
          %v1485 = vadd.f32 0.0, %v1484
          %v1486 = vpop.f32.mrb[0].mxu0
          %v1487 = vadd.f32 0.0, %v1486
          %v1488 = vpop.f32.mrb[0].mxu0
          %v1489 = vadd.f32 0.0, %v1488
          %v1490 = vpop.f32.mrb[0].mxu0
          %v1491 = vadd.f32 0.0, %v1490
          %1492 = vmatprep.mubr.bf16.mxu0 %v1428
          %1493 = vmatmul.mubr.bf16.gmra.mrb[0].mxu0 %v1411
          %v1494 = vpop.f32.mrb[0].mxu0
          %v1495 = vadd.f32 0.0, %v1494
          %v1496 = vpop.f32.mrb[0].mxu0
          %v1497 = vadd.f32 0.0, %v1496
          %v1498 = vpop.f32.mrb[0].mxu0
          %v1499 = vadd.f32 0.0, %v1498
          %v1500 = vpop.f32.mrb[0].mxu0
          %v1501 = vadd.f32 0.0, %v1500
          %1502 = vdwg.mxu0
          %v1504 = vlaneseq
          %v1505 = vshrl.u32 %v1504, 7
          %v1506 = vsub.s32 0, %v1505
          %v1507 = vrot.slane %v252, %v1506
          %v1508 = vlaneseq
          %v1509 = vshrl.u32 %v1508, 7
          %v1510 = vsub.s32 1, %v1509
          %v1511 = vrot.slane %v252, %v1510
          %v1514 = vmul.f32 %v1507, %v1465
          %v1515 = vmul.f32 %v1511, %v1467
          %v1516 = vmul.f32 %v1507, %v1469
          %v1517 = vmul.f32 %v1511, %v1471
          %v1518 = vmul.f32 %v1507, %v1475
          %v1519 = vmul.f32 %v1511, %v1477
          %v1520 = vmul.f32 %v1507, %v1479
          %v1521 = vmul.f32 %v1511, %v1481
          %v1522 = vmul.f32 %v1507, %v1485
          %v1523 = vmul.f32 %v1511, %v1487
          %v1524 = vmul.f32 %v1507, %v1489
          %v1525 = vmul.f32 %v1511, %v1491
          %v1526 = vmul.f32 %v1507, %v1495
          %v1527 = vmul.f32 %v1511, %v1497
          %v1528 = vmul.f32 %v1507, %v1499
          %v1529 = vmul.f32 %v1511, %v1501
          %v1538 = vunpack.c.l.b16 %v1251
          %v1539 = vunpack.c.h.b16 %v1251
          %v1540 = vunpack.c.l.b16 %v1252
          %v1541 = vunpack.c.h.b16 %v1252
          %v1542 = vunpack.c.l.b16 %v1253
          %v1543 = vunpack.c.h.b16 %v1253
          %v1544 = vunpack.c.l.b16 %v1254
          %v1545 = vunpack.c.h.b16 %v1254
          %v1546 = vunpack.c.l.b16 %v1255
          %v1547 = vunpack.c.h.b16 %v1255
          %v1548 = vunpack.c.l.b16 %v1256
          %v1549 = vunpack.c.h.b16 %v1256
          %v1550 = vunpack.c.l.b16 %v1257
          %v1551 = vunpack.c.h.b16 %v1257
          %v1552 = vunpack.c.l.b16 %v1258
          %v1553 = vunpack.c.h.b16 %v1258
          %v1554 = vpack.c.b16 %v1540, %v1538
          %v1555 = vpack.c.b16 %v1541, %v1539
          %v1556 = vpack.c.b16 %v1544, %v1542
          %v1557 = vpack.c.b16 %v1545, %v1543
          %v1558 = vpack.c.b16 %v1548, %v1546
          %v1559 = vpack.c.b16 %v1549, %v1547
          %v1560 = vpack.c.b16 %v1552, %v1550
          %v1561 = vpack.c.b16 %v1553, %v1551
          %1566 = vrot.lane.b32.xlu0 %v1259, 127
          %v1567 = vpop.permute.xlu0 %1566
          %1568 = vrot.lane.b32.xlu0 %v1260, 127
          %v1569 = vpop.permute.xlu0 %1568
          %1570 = vrot.lane.b32.xlu0 %v1261, 127
          %v1571 = vpop.permute.xlu0 %1570
          %1572 = vrot.lane.b32.xlu0 %v1262, 127
          %v1573 = vpop.permute.xlu0 %1572
          %1574 = vrot.lane.b32.xlu0 %v1263, 127
          %v1575 = vpop.permute.xlu0 %1574
          %1576 = vrot.lane.b32.xlu0 %v1264, 127
          %v1577 = vpop.permute.xlu0 %1576
          %1578 = vrot.lane.b32.xlu0 %v1265, 127
          %v1579 = vpop.permute.xlu0 %1578
          %1580 = vrot.lane.b32.xlu0 %v1266, 127
          %v1581 = vpop.permute.xlu0 %1580
          %1582 = vrot.lane.b32.xlu0 %v1267, 127
          %v1583 = vpop.permute.xlu0 %1582
          %1584 = vrot.lane.b32.xlu0 %v1268, 127
          %v1585 = vpop.permute.xlu0 %1584
          %1586 = vrot.lane.b32.xlu0 %v1269, 127
          %v1587 = vpop.permute.xlu0 %1586
          %1588 = vrot.lane.b32.xlu0 %v1270, 127
          %v1589 = vpop.permute.xlu0 %1588
          %1590 = vrot.lane.b32.xlu0 %v1308, 127
          %v1591 = vpop.permute.xlu0 %1590
          %1592 = vrot.lane.b32.xlu0 %v1309, 127
          %v1593 = vpop.permute.xlu0 %1592
          %1594 = vrot.lane.b32.xlu0 %v1288, 127
          %v1595 = vpop.permute.xlu0 %1594
          %1596 = vrot.lane.b32.xlu0 %v1310, 127
          %v1597 = vpop.permute.xlu0 %1596
          %1598 = vrot.lane.b32.xlu0 %v1311, 127
          %v1599 = vpop.permute.xlu0 %1598
          %1600 = vrot.lane.b32.xlu0 %v1294, 127
          %v1601 = vpop.permute.xlu0 %1600
          %1602 = vrot.lane.b32.xlu0 %v1312, 127
          %v1603 = vpop.permute.xlu0 %1602
          %1604 = vrot.lane.b32.xlu0 %v1313, 127
          %v1605 = vpop.permute.xlu0 %1604
          %1606 = vrot.lane.b32.xlu0 %v1300, 127
          %v1607 = vpop.permute.xlu0 %1606
          %1608 = vrot.lane.b32.xlu0 %v1314, 127
          %v1609 = vpop.permute.xlu0 %1608
          %1610 = vrot.lane.b32.xlu0 %v1315, 127
          %v1611 = vpop.permute.xlu0 %1610
          %1612 = vrot.lane.b32.xlu0 %v1306, 127
          %v1613 = vpop.permute.xlu0 %1612
          %1614 = vrot.lane.b32.xlu0 %v1341, 127
          %v1615 = vpop.permute.xlu0 %1614
          %1616 = vrot.lane.b32.xlu0 %v1342, 127
          %v1617 = vpop.permute.xlu0 %1616
          %1618 = vrot.lane.b32.xlu0 %v1321, 127
          %v1619 = vpop.permute.xlu0 %1618
          %1620 = vrot.lane.b32.xlu0 %v1343, 127
          %v1621 = vpop.permute.xlu0 %1620
          %1622 = vrot.lane.b32.xlu0 %v1344, 127
          %v1623 = vpop.permute.xlu0 %1622
          %1624 = vrot.lane.b32.xlu0 %v1327, 127
          %v1625 = vpop.permute.xlu0 %1624
          %1626 = vrot.lane.b32.xlu0 %v1345, 127
          %v1627 = vpop.permute.xlu0 %1626
          %1628 = vrot.lane.b32.xlu0 %v1346, 127
          %v1629 = vpop.permute.xlu0 %1628
          %1630 = vrot.lane.b32.xlu0 %v1333, 127
          %v1631 = vpop.permute.xlu0 %1630
          %1632 = vrot.lane.b32.xlu0 %v1347, 127
          %v1633 = vpop.permute.xlu0 %1632
          %1634 = vrot.lane.b32.xlu0 %v1348, 127
          %v1635 = vpop.permute.xlu0 %1634
          %1636 = vrot.lane.b32.xlu0 %v1339, 127
          %v1637 = vpop.permute.xlu0 %1636
          %vm1638 = vcmask 1039360
          %v1639 = vsel %vm1638, %v1567, %v1569
          %v1640 = vsel %vm1638, %v1569, %v1571
          %v1641 = vsel %vm1638, %v1573, %v1575
          %v1642 = vsel %vm1638, %v1575, %v1577
          %v1643 = vsel %vm1638, %v1579, %v1581
          %v1644 = vsel %vm1638, %v1581, %v1583
          %v1645 = vsel %vm1638, %v1585, %v1587
          %v1646 = vsel %vm1638, %v1587, %v1589
          %v1647 = vsel %vm1638, %v1591, %v1593
          %v1648 = vsel %vm1638, %v1593, %v1595
          %v1649 = vsel %vm1638, %v1597, %v1599
          %v1650 = vsel %vm1638, %v1599, %v1601
          %v1651 = vsel %vm1638, %v1603, %v1605
          %v1652 = vsel %vm1638, %v1605, %v1607
          %v1653 = vsel %vm1638, %v1609, %v1611
          %v1654 = vsel %vm1638, %v1611, %v1613
          %v1655 = vsel %vm1638, %v1615, %v1617
          %v1656 = vsel %vm1638, %v1617, %v1619
          %v1657 = vsel %vm1638, %v1621, %v1623
          %v1658 = vsel %vm1638, %v1623, %v1625
          %v1659 = vsel %vm1638, %v1627, %v1629
          %v1660 = vsel %vm1638, %v1629, %v1631
          %v1661 = vsel %vm1638, %v1633, %v1635
          %v1662 = vsel %vm1638, %v1635, %v1637
          %v1688 = vsel %vm1417, %v1555, 0
          %v1691 = vsel %vm1417, %v1557, 0
          %v1694 = vsel %vm1417, %v1559, 0
          %v1697 = vsel %vm1417, %v1561, 0
          %1699 = vmatprep.subr.bf16.mxu0 %v1640
          %1700 = vmatpush1.bf16.msra.mxu0 %v1639
          %1701 = vmatprep.subr.bf16.mxu0 %v1642
          %1702 = vmatpush1.bf16.msra.mxu0 %v1641
          %1703 = vmatprep.subr.bf16.mxu0 %v1644
          %1704 = vmatpush1.bf16.msra.mxu0 %v1643
          %1705 = vmatprep.subr.bf16.mxu0 %v1646
          %1706 = vmatpush1.bf16.msra.mxu0 %v1645
          %1707 = vmatprep.subr.bf16.mxu0 %v1648
          %1708 = vmatpush1.bf16.msra.mxu0 %v1647
          %1709 = vmatprep.subr.bf16.mxu0 %v1650
          %1710 = vmatpush1.bf16.msra.mxu0 %v1649
          %1711 = vmatprep.subr.bf16.mxu0 %v1652
          %1712 = vmatpush1.bf16.msra.mxu0 %v1651
          %1713 = vmatprep.subr.bf16.mxu0 %v1654
          %1714 = vmatpush1.bf16.msra.mxu0 %v1653
          %1715 = vmatprep.subr.bf16.mxu0 %v1656
          %1716 = vmatpush1.bf16.msra.mxu0 %v1655
          %1717 = vmatprep.subr.bf16.mxu0 %v1658
          %1718 = vmatpush1.bf16.msra.mxu0 %v1657
          %1719 = vmatprep.subr.bf16.mxu0 %v1660
          %1720 = vmatpush1.bf16.msra.mxu0 %v1659
          %1721 = vmatprep.subr.bf16.mxu0 %v1662
          %1722 = vmatpush1.bf16.msra.mxu0 %v1661
          %1723 = vmatprep.subr.bf16.mxu0 0
          %1724 = vmatpush1.bf16.msra.mxu0 0
          %1725 = vmatprep.subr.bf16.mxu0 0
          %1726 = vmatpush1.bf16.msra.mxu0 0
          %1727 = vmatprep.subr.bf16.mxu0 0
          %1728 = vmatpush1.bf16.msra.mxu0 0
          %1729 = vmatprep.subr.bf16.mxu0 0
          %1730 = vmatpush1.bf16.msra.mxu0 0
          %1731 = vmatprep.mubr.bf16.mxu0 %v1688
          %1732 = vmatmul.mubr.bf16.gmra.mrb[0].mxu0 %v1554
          %v1733 = vpop.f32.mrb[0].mxu0
          %v1734 = vadd.f32 %v1514, %v1733
          %v1735 = vpop.f32.mrb[0].mxu0
          %v1736 = vadd.f32 %v1515, %v1735
          %v1737 = vpop.f32.mrb[0].mxu0
          %v1738 = vadd.f32 %v1516, %v1737
          %v1739 = vpop.f32.mrb[0].mxu0
          %v1740 = vadd.f32 %v1517, %v1739
          %1741 = vmatprep.mubr.bf16.mxu0 %v1691
          %1742 = vmatmul.mubr.bf16.gmra.mrb[0].mxu0 %v1556
          %v1743 = vpop.f32.mrb[0].mxu0
          %v1744 = vadd.f32 %v1518, %v1743
          %v1745 = vpop.f32.mrb[0].mxu0
          %v1746 = vadd.f32 %v1519, %v1745
          %v1747 = vpop.f32.mrb[0].mxu0
          %v1748 = vadd.f32 %v1520, %v1747
          %v1749 = vpop.f32.mrb[0].mxu0
          %v1750 = vadd.f32 %v1521, %v1749
          %1751 = vmatprep.mubr.bf16.mxu0 %v1694
          %1752 = vmatmul.mubr.bf16.gmra.mrb[0].mxu0 %v1558
          %v1753 = vpop.f32.mrb[0].mxu0
          %v1754 = vadd.f32 %v1522, %v1753
          %v1755 = vpop.f32.mrb[0].mxu0
          %v1756 = vadd.f32 %v1523, %v1755
          %v1757 = vpop.f32.mrb[0].mxu0
          %v1758 = vadd.f32 %v1524, %v1757
          %v1759 = vpop.f32.mrb[0].mxu0
          %v1760 = vadd.f32 %v1525, %v1759
          %1761 = vmatprep.mubr.bf16.mxu0 %v1697
          %1762 = vmatmul.mubr.bf16.gmra.mrb[0].mxu0 %v1560
          %v1763 = vpop.f32.mrb[0].mxu0
          %v1764 = vadd.f32 %v1526, %v1763
          %v1765 = vpop.f32.mrb[0].mxu0
          %v1766 = vadd.f32 %v1527, %v1765
          %v1767 = vpop.f32.mrb[0].mxu0
          %v1768 = vadd.f32 %v1528, %v1767
          %v1769 = vpop.f32.mrb[0].mxu0
          %v1770 = vadd.f32 %v1529, %v1769
          %1771 = vdwg.mxu0
          %s1772 = scalar_lea.vmem %s219, 128 [#allocation7]
          %v1773 = vld [vmem:[%s1772] sm:$0xff]
          %v1774 = vld [vmem:[%s1772 + $0x8] sm:$0xff]
          %v1775 = vld [vmem:[%s1772 + $0x10] sm:$0xff]
          %v1776 = vld [vmem:[%s1772 + $0x18] sm:$0xff]
          %v1777 = vld [vmem:[%s1772 + $0x20] sm:$0xff]
          %v1778 = vld [vmem:[%s1772 + $0x28] sm:$0xff]
          %v1779 = vld [vmem:[%s1772 + $0x30] sm:$0xff]
          %v1780 = vld [vmem:[%s1772 + $0x38] sm:$0xff]
          %v1789 = vunpack.c.l.b16 %v1773
          %v1790 = vunpack.c.h.b16 %v1773
          %v1791 = vunpack.c.l.b16 %v1774
          %v1792 = vunpack.c.h.b16 %v1774
          %v1793 = vunpack.c.l.b16 %v1775
          %v1794 = vunpack.c.h.b16 %v1775
          %v1795 = vunpack.c.l.b16 %v1776
          %v1796 = vunpack.c.h.b16 %v1776
          %v1797 = vunpack.c.l.b16 %v1777
          %v1798 = vunpack.c.h.b16 %v1777
          %v1799 = vunpack.c.l.b16 %v1778
          %v1800 = vunpack.c.h.b16 %v1778
          %v1801 = vunpack.c.l.b16 %v1779
          %v1802 = vunpack.c.h.b16 %v1779
          %v1803 = vunpack.c.l.b16 %v1780
          %v1804 = vunpack.c.h.b16 %v1780
          %v1805 = vpack.c.b16 %v1791, %v1789
          %v1806 = vpack.c.b16 %v1792, %v1790
          %v1807 = vpack.c.b16 %v1795, %v1793
          %v1808 = vpack.c.b16 %v1796, %v1794
          %v1809 = vpack.c.b16 %v1799, %v1797
          %v1810 = vpack.c.b16 %v1800, %v1798
          %v1811 = vpack.c.b16 %v1803, %v1801
          %v1812 = vpack.c.b16 %v1804, %v1802
          %1817 = vrot.lane.b32.xlu0 %v1259, 126
          %v1818 = vpop.permute.xlu0 %1817
          %1819 = vrot.lane.b32.xlu0 %v1260, 126
          %v1820 = vpop.permute.xlu0 %1819
          %1821 = vrot.lane.b32.xlu0 %v1261, 126
          %v1822 = vpop.permute.xlu0 %1821
          %1823 = vrot.lane.b32.xlu0 %v1262, 126
          %v1824 = vpop.permute.xlu0 %1823
          %1825 = vrot.lane.b32.xlu0 %v1263, 126
          %v1826 = vpop.permute.xlu0 %1825
          %1827 = vrot.lane.b32.xlu0 %v1264, 126
          %v1828 = vpop.permute.xlu0 %1827
          %1829 = vrot.lane.b32.xlu0 %v1265, 126
          %v1830 = vpop.permute.xlu0 %1829
          %1831 = vrot.lane.b32.xlu0 %v1266, 126
          %v1832 = vpop.permute.xlu0 %1831
          %1833 = vrot.lane.b32.xlu0 %v1267, 126
          %v1834 = vpop.permute.xlu0 %1833
          %1835 = vrot.lane.b32.xlu0 %v1268, 126
          %v1836 = vpop.permute.xlu0 %1835
          %1837 = vrot.lane.b32.xlu0 %v1269, 126
          %v1838 = vpop.permute.xlu0 %1837
          %1839 = vrot.lane.b32.xlu0 %v1270, 126
          %v1840 = vpop.permute.xlu0 %1839
          %1841 = vrot.lane.b32.xlu0 %v1308, 126
          %v1842 = vpop.permute.xlu0 %1841
          %1843 = vrot.lane.b32.xlu0 %v1309, 126
          %v1844 = vpop.permute.xlu0 %1843
          %1845 = vrot.lane.b32.xlu0 %v1288, 126
          %v1846 = vpop.permute.xlu0 %1845
          %1847 = vrot.lane.b32.xlu0 %v1310, 126
          %v1848 = vpop.permute.xlu0 %1847
          %1849 = vrot.lane.b32.xlu0 %v1311, 126
          %v1850 = vpop.permute.xlu0 %1849
          %1851 = vrot.lane.b32.xlu0 %v1294, 126
          %v1852 = vpop.permute.xlu0 %1851
          %1853 = vrot.lane.b32.xlu0 %v1312, 126
          %v1854 = vpop.permute.xlu0 %1853
          %1855 = vrot.lane.b32.xlu0 %v1313, 126
          %v1856 = vpop.permute.xlu0 %1855
          %1857 = vrot.lane.b32.xlu0 %v1300, 126
          %v1858 = vpop.permute.xlu0 %1857
          %1859 = vrot.lane.b32.xlu0 %v1314, 126
          %v1860 = vpop.permute.xlu0 %1859
          %1861 = vrot.lane.b32.xlu0 %v1315, 126
          %v1862 = vpop.permute.xlu0 %1861
          %1863 = vrot.lane.b32.xlu0 %v1306, 126
          %v1864 = vpop.permute.xlu0 %1863
          %1865 = vrot.lane.b32.xlu0 %v1341, 126
          %v1866 = vpop.permute.xlu0 %1865
          %1867 = vrot.lane.b32.xlu0 %v1342, 126
          %v1868 = vpop.permute.xlu0 %1867
          %1869 = vrot.lane.b32.xlu0 %v1321, 126
          %v1870 = vpop.permute.xlu0 %1869
          %1871 = vrot.lane.b32.xlu0 %v1343, 126
          %v1872 = vpop.permute.xlu0 %1871
          %1873 = vrot.lane.b32.xlu0 %v1344, 126
          %v1874 = vpop.permute.xlu0 %1873
          %1875 = vrot.lane.b32.xlu0 %v1327, 126
          %v1876 = vpop.permute.xlu0 %1875
          %1877 = vrot.lane.b32.xlu0 %v1345, 126
          %v1878 = vpop.permute.xlu0 %1877
          %1879 = vrot.lane.b32.xlu0 %v1346, 126
          %v1880 = vpop.permute.xlu0 %1879
          %1881 = vrot.lane.b32.xlu0 %v1333, 126
          %v1882 = vpop.permute.xlu0 %1881
          %1883 = vrot.lane.b32.xlu0 %v1347, 126
          %v1884 = vpop.permute.xlu0 %1883
          %1885 = vrot.lane.b32.xlu0 %v1348, 126
          %v1886 = vpop.permute.xlu0 %1885
          %1887 = vrot.lane.b32.xlu0 %v1339, 126
          %v1888 = vpop.permute.xlu0 %1887
          %vm1889 = vcmask 1031168
          %v1890 = vsel %vm1889, %v1818, %v1820
          %v1891 = vsel %vm1889, %v1820, %v1822
          %v1892 = vsel %vm1889, %v1824, %v1826
          %v1893 = vsel %vm1889, %v1826, %v1828
          %v1894 = vsel %vm1889, %v1830, %v1832
          %v1895 = vsel %vm1889, %v1832, %v1834
          %v1896 = vsel %vm1889, %v1836, %v1838
          %v1897 = vsel %vm1889, %v1838, %v1840
          %v1898 = vsel %vm1889, %v1842, %v1844
          %v1899 = vsel %vm1889, %v1844, %v1846
          %v1900 = vsel %vm1889, %v1848, %v1850
          %v1901 = vsel %vm1889, %v1850, %v1852
          %v1902 = vsel %vm1889, %v1854, %v1856
          %v1903 = vsel %vm1889, %v1856, %v1858
          %v1904 = vsel %vm1889, %v1860, %v1862
          %v1905 = vsel %vm1889, %v1862, %v1864
          %v1906 = vsel %vm1889, %v1866, %v1868
          %v1907 = vsel %vm1889, %v1868, %v1870
          %v1908 = vsel %vm1889, %v1872, %v1874
          %v1909 = vsel %vm1889, %v1874, %v1876
          %v1910 = vsel %vm1889, %v1878, %v1880
          %v1911 = vsel %vm1889, %v1880, %v1882
          %v1912 = vsel %vm1889, %v1884, %v1886
          %v1913 = vsel %vm1889, %v1886, %v1888
          %v1939 = vsel %vm1417, %v1806, 0
          %v1942 = vsel %vm1417, %v1808, 0
          %v1945 = vsel %vm1417, %v1810, 0
          %v1948 = vsel %vm1417, %v1812, 0
          %1950 = vmatprep.subr.bf16.mxu0 %v1891
          %1951 = vmatpush1.bf16.msra.mxu0 %v1890
          %1952 = vmatprep.subr.bf16.mxu0 %v1893
          %1953 = vmatpush1.bf16.msra.mxu0 %v1892
          %1954 = vmatprep.subr.bf16.mxu0 %v1895
          %1955 = vmatpush1.bf16.msra.mxu0 %v1894
          %1956 = vmatprep.subr.bf16.mxu0 %v1897
          %1957 = vmatpush1.bf16.msra.mxu0 %v1896
          %1958 = vmatprep.subr.bf16.mxu0 %v1899
          %1959 = vmatpush1.bf16.msra.mxu0 %v1898
          %1960 = vmatprep.subr.bf16.mxu0 %v1901
          %1961 = vmatpush1.bf16.msra.mxu0 %v1900
          %1962 = vmatprep.subr.bf16.mxu0 %v1903
          %1963 = vmatpush1.bf16.msra.mxu0 %v1902
          %1964 = vmatprep.subr.bf16.mxu0 %v1905
          %1965 = vmatpush1.bf16.msra.mxu0 %v1904
          %1966 = vmatprep.subr.bf16.mxu0 %v1907
          %1967 = vmatpush1.bf16.msra.mxu0 %v1906
          %1968 = vmatprep.subr.bf16.mxu0 %v1909
          %1969 = vmatpush1.bf16.msra.mxu0 %v1908
          %1970 = vmatprep.subr.bf16.mxu0 %v1911
          %1971 = vmatpush1.bf16.msra.mxu0 %v1910
          %1972 = vmatprep.subr.bf16.mxu0 %v1913
          %1973 = vmatpush1.bf16.msra.mxu0 %v1912
          %1974 = vmatprep.subr.bf16.mxu0 0
          %1975 = vmatpush1.bf16.msra.mxu0 0
          %1976 = vmatprep.subr.bf16.mxu0 0
          %1977 = vmatpush1.bf16.msra.mxu0 0
          %1978 = vmatprep.subr.bf16.mxu0 0
          %1979 = vmatpush1.bf16.msra.mxu0 0
          %1980 = vmatprep.subr.bf16.mxu0 0
          %1981 = vmatpush1.bf16.msra.mxu0 0
          %1982 = vmatprep.mubr.bf16.mxu0 %v1939
          %1983 = vmatmul.mubr.bf16.gmra.mrb[0].mxu0 %v1805
          %v1984 = vpop.f32.mrb[0].mxu0
          %v1985 = vadd.f32 0.0, %v1984
          %v1986 = vpop.f32.mrb[0].mxu0
          %v1987 = vadd.f32 0.0, %v1986
          %v1988 = vpop.f32.mrb[0].mxu0
          %v1989 = vadd.f32 0.0, %v1988
          %v1990 = vpop.f32.mrb[0].mxu0
          %v1991 = vadd.f32 0.0, %v1990
          %1992 = vmatprep.mubr.bf16.mxu0 %v1942
          %1993 = vmatmul.mubr.bf16.gmra.mrb[0].mxu0 %v1807
          %v1994 = vpop.f32.mrb[0].mxu0
          %v1995 = vadd.f32 0.0, %v1994
          %v1996 = vpop.f32.mrb[0].mxu0
          %v1997 = vadd.f32 0.0, %v1996
          %v1998 = vpop.f32.mrb[0].mxu0
          %v1999 = vadd.f32 0.0, %v1998
          %v2000 = vpop.f32.mrb[0].mxu0
          %v2001 = vadd.f32 0.0, %v2000
          %2002 = vmatprep.mubr.bf16.mxu0 %v1945
          %2003 = vmatmul.mubr.bf16.gmra.mrb[0].mxu0 %v1809
          %v2004 = vpop.f32.mrb[0].mxu0
          %v2005 = vadd.f32 0.0, %v2004
          %v2006 = vpop.f32.mrb[0].mxu0
          %v2007 = vadd.f32 0.0, %v2006
          %v2008 = vpop.f32.mrb[0].mxu0
          %v2009 = vadd.f32 0.0, %v2008
          %v2010 = vpop.f32.mrb[0].mxu0
          %v2011 = vadd.f32 0.0, %v2010
          %2012 = vmatprep.mubr.bf16.mxu0 %v1948
          %2013 = vmatmul.mubr.bf16.gmra.mrb[0].mxu0 %v1811
          %v2014 = vpop.f32.mrb[0].mxu0
          %v2015 = vadd.f32 0.0, %v2014
          %v2016 = vpop.f32.mrb[0].mxu0
          %v2017 = vadd.f32 0.0, %v2016
          %v2018 = vpop.f32.mrb[0].mxu0
          %v2019 = vadd.f32 0.0, %v2018
          %v2020 = vpop.f32.mrb[0].mxu0
          %v2021 = vadd.f32 0.0, %v2020
          %2022 = vdwg.mxu0
          %v2024 = vlaneseq
          %v2025 = vshrl.u32 %v2024, 7
          %v2026 = vsub.s32 0, %v2025
          %v2027 = vrot.slane %v254, %v2026
          %v2028 = vlaneseq
          %v2029 = vshrl.u32 %v2028, 7
          %v2030 = vsub.s32 1, %v2029
          %v2031 = vrot.slane %v254, %v2030
          %v2034 = vmul.f32 %v2027, %v1985
          %v2035 = vmul.f32 %v2031, %v1987
          %v2036 = vmul.f32 %v2027, %v1989
          %v2037 = vmul.f32 %v2031, %v1991
          %v2038 = vmul.f32 %v2027, %v1995
          %v2039 = vmul.f32 %v2031, %v1997
          %v2040 = vmul.f32 %v2027, %v1999
          %v2041 = vmul.f32 %v2031, %v2001
          %v2042 = vmul.f32 %v2027, %v2005
          %v2043 = vmul.f32 %v2031, %v2007
          %v2044 = vmul.f32 %v2027, %v2009
          %v2045 = vmul.f32 %v2031, %v2011
          %v2046 = vmul.f32 %v2027, %v2015
          %v2047 = vmul.f32 %v2031, %v2017
          %v2048 = vmul.f32 %v2027, %v2019
          %v2049 = vmul.f32 %v2031, %v2021
          %v2050 = vadd.f32 %v1734, %v2034
          %v2051 = vadd.f32 %v1736, %v2035
          %v2052 = vadd.f32 %v1738, %v2036
          %v2053 = vadd.f32 %v1740, %v2037
          %v2054 = vadd.f32 %v1744, %v2038
          %v2055 = vadd.f32 %v1746, %v2039
          %v2056 = vadd.f32 %v1748, %v2040
          %v2057 = vadd.f32 %v1750, %v2041
          %v2058 = vadd.f32 %v1754, %v2042
          %v2059 = vadd.f32 %v1756, %v2043
          %v2060 = vadd.f32 %v1758, %v2044
          %v2061 = vadd.f32 %v1760, %v2045
          %v2062 = vadd.f32 %v1764, %v2046
          %v2063 = vadd.f32 %v1766, %v2047
          %v2064 = vadd.f32 %v1768, %v2048
          %v2065 = vadd.f32 %v1770, %v2049
          %p2066 = scmp.lt.s32.totalorder %s28, 19
          // Predicated region
          $region65: #{vdsr_forward.1} parent=63 // pred_check
            %p2067 = pneg %p2066
          $region66: #{vdsr_forward.1} parent=63 // pred_check_branch
            %2069 = sbr.rel (%p2067) target = $region68
          $region67: #{vdsr_forward.1} parent=63 // pred_region
            %v2070 = vmax.f32 %v2050, 0.0
            %v2071 = vmax.f32 %v2051, 0.0
            %v2072 = vmax.f32 %v2052, 0.0
            %v2073 = vmax.f32 %v2053, 0.0
            %v2074 = vmax.f32 %v2054, 0.0
            %v2075 = vmax.f32 %v2055, 0.0
            %v2076 = vmax.f32 %v2056, 0.0
            %v2077 = vmax.f32 %v2057, 0.0
            %v2078 = vmax.f32 %v2058, 0.0
            %v2079 = vmax.f32 %v2059, 0.0
            %v2080 = vmax.f32 %v2060, 0.0
            %v2081 = vmax.f32 %v2061, 0.0
            %v2082 = vmax.f32 %v2062, 0.0
            %v2083 = vmax.f32 %v2063, 0.0
            %v2084 = vmax.f32 %v2064, 0.0
            %v2085 = vmax.f32 %v2065, 0.0
            %v2086 = vpack.c.bf16 %v2072, %v2070
            %v2087 = vpack.c.bf16 %v2073, %v2071
            %v2088 = vpack.c.bf16 %v2076, %v2074
            %v2089 = vpack.c.bf16 %v2077, %v2075
            %v2090 = vpack.c.bf16 %v2080, %v2078
            %v2091 = vpack.c.bf16 %v2081, %v2079
            %v2092 = vpack.c.bf16 %v2084, %v2082
            %v2093 = vpack.c.bf16 %v2085, %v2083
            %2102 = vrot.lane.b32.xlu0 %v2086, 17
            %v2103 = vpop.permute.xlu0 %2102
            %2104 = vrot.lane.b32.xlu0 %v2087, 17
            %v2105 = vpop.permute.xlu0 %2104
            %2106 = vrot.lane.b32.xlu0 %v2088, 17
            %v2107 = vpop.permute.xlu0 %2106
            %2108 = vrot.lane.b32.xlu0 %v2089, 17
            %v2109 = vpop.permute.xlu0 %2108
            %2110 = vrot.lane.b32.xlu0 %v2090, 17
            %v2111 = vpop.permute.xlu0 %2110
            %2112 = vrot.lane.b32.xlu0 %v2091, 17
            %v2113 = vpop.permute.xlu0 %2112
            %2114 = vrot.lane.b32.xlu0 %v2092, 17
            %v2115 = vpop.permute.xlu0 %2114
            %2116 = vrot.lane.b32.xlu0 %v2093, 17
            %v2117 = vpop.permute.xlu0 %2116
            %vm2118 = vcmask 138240
            %v2119 = vsel %vm2118, %v2103, %v2105
            %v2120 = vsel %vm2118, %v2107, %v2109
            %v2121 = vsel %vm2118, %v2111, %v2113
            %v2122 = vsel %vm2118, %v2115, %v2117
            %vm2135 = vcmask 1047688
            %2136 = vst.msk [vmem:[#allocation2] sm:$0xff] %vm2135, %v2103
            %2137 = vst [vmem:[#allocation2 + $0x8] sm:$0xff] %v2119
            %vm2138 = vcmask 138240
            %2139 = vst.msk [vmem:[#allocation2 + $0x10] sm:$0xff] %vm2138, %v2105
            %2140 = vst.msk [vmem:[#allocation2 + $0x18] sm:$0xff] %vm2135, %v2107
            %2141 = vst [vmem:[#allocation2 + $0x20] sm:$0xff] %v2120
            %2142 = vst.msk [vmem:[#allocation2 + $0x28] sm:$0xff] %vm2138, %v2109
            %2143 = vst.msk [vmem:[#allocation2 + $0x30] sm:$0xff] %vm2135, %v2111
            %2144 = vst [vmem:[#allocation2 + $0x38] sm:$0xff] %v2121
            %2145 = vst.msk [vmem:[#allocation2 + $0x40] sm:$0xff] %vm2138, %v2113
            %2146 = vst.msk [vmem:[#allocation2 + $0x48] sm:$0xff] %vm2135, %v2115
            %2147 = vst [vmem:[#allocation2 + $0x50] sm:$0xff] %v2122
            %2148 = vst.msk [vmem:[#allocation2 + $0x58] sm:$0xff] %vm2138, %v2117
          $region68: #{vdsr_forward.1} parent=63 // pred_fallthru
            _
          %p2149 = scmp.eq.s32.totalorder %s28, 19
          // Predicated region
          $region69: #{vdsr_forward.1} parent=63 // pred_check
            %p2150 = pneg %p2149
          $region70: #{vdsr_forward.1} parent=63 // pred_check_branch
            %2152 = sbr.rel (%p2150) target = $region72
          $region71: #{vdsr_forward.1} parent=63 // pred_region
            %v2153 = vld [vmem:[%s210] sm:$0x77]
            %v2155 = vcombine.high %v2153, %v2153
            %v2157 = vadd.f32 %v2050, %v2153
            %v2158 = vadd.f32 %v2051, %v2155
            %v2161 = vcombine.low %v2157, %v2158
            %2163 = vst [vmem:[%s250] sm:$0x77] %v2161
          $region72: #{vdsr_forward.1} parent=63 // pred_fallthru
            _
        $region64: #{vdsr_forward.1} parent=31 // pred_fallthru
          _
        %s2164 = sand.u32 %s116, 1
        %s2165 = scalar_lea.sflag [#allocation6], %s2164
        %s2166 = sand.u32 %s116, 1
        %s2167 = smul.addr %s2166, 8
        %s2168 = scalar_lea.vmem [#allocation10], %s2167
        // Predicated region
        $region73: #{vdsr_forward.1} parent=31 // pred_check
          %p2169 = pneg %p126
        $region74: #{vdsr_forward.1} parent=31 // pred_check_branch
          %2171 = sbr.rel (%p2169) target = $region76
        $region75: #{vdsr_forward.1} parent=31 // pred_region
          %s2173 = ssub.s32 128, 128
          %2174 = vsyncadd %s2165, %s2173
          %s2175 = smul.addr %s27, 2
          %s2176 = smul.addr %s2175, 64
          %s2177 = scalar_lea.hbm %s3, %s2176
          %s2179 = sshll.u32 %s2168, 4
          %s2180 = int_to_ptr.vmem [resolvable:$true] %s2179
          %2182 = dma.vmem_to_hbm [thread:$0]  %s2180, 128, %s2177, %s2165
        $region76: #{vdsr_forward.1} parent=31 // pred_fallthru
          _
      $region32: #{vdsr_forward.1} parent=5 // pred_fallthru
        _
      %p2183 = scmp.le.s32.totalorder 2, %s18
      // Predicated region
      $region77: #{vdsr_forward.1} parent=5 // pred_check
        %p2184 = pneg %p2183
      $region78: #{vdsr_forward.1} parent=5 // pred_check_branch
        %2186 = sbr.rel (%p2184) target = $region80
      $region79: #{vdsr_forward.1} parent=5 // pred_region
        %s2187 = ssub.s32 %s18, 2
        // Predicated region
        $region81: #{vdsr_forward.1} parent=79 // pred_check
          %p2188 = pneg %p132
        $region82: #{vdsr_forward.1} parent=79 // pred_check_branch
          %2190 = sbr.rel (%p2188) target = $region84
        $region83: #{vdsr_forward.1} parent=79 // pred_region
          %s2191 = sand.u32 %s117, 1
          %s2192 = scalar_lea.sflag [#allocation6], %s2191
          %s2193 = sand.u32 %s117, 1
          %s2194 = smul.addr %s2193, 8
          %s2195 = scalar_lea.vmem [#allocation10], %s2194
          %2196 = dma.done %s2192, 128
        $region84: #{vdsr_forward.1} parent=79 // pred_fallthru
          _
      $region80: #{vdsr_forward.1} parent=5 // pred_fallthru
        _
    $region6: #{vdsr_forward.1} parent=1 // loop_footer
      %s22 = sadd.s32 1, %s18
    $region7: #{vdsr_forward.1} parent=1 // loop_footer_branch
      %17 = sbr.rel target = $region3
    $region8: #{vdsr_forward.1} parent=1 // loop_exit
      _
    %2197 = vsyncpa [#allocation5], 1
    %s2198 = scalar_lea.sflag [#allocation5], 1
    %2199 = vsyncpa %s2198, 1
    %2200 = vsyncpa [#allocation8], 1
    %s2201 = scalar_lea.sflag [#allocation8], 1
    %2202 = vsyncpa %s2201, 1
    %2203 = vsyncpa [#allocation6], 1
    %s2204 = scalar_lea.sflag [#allocation6], 1
    %2205 = vsyncpa %s2204, 1

</llo_original>
